<compile_context>
chip_gen: v7x
topology: tpu7x:2x2x1
jax: 0.10.0
libtpu: 0.0.40
codegen_flags: <defaults>
</compile_context>

<pallas_src>
import functools

import jax
import jax.numpy as jnp
from jax import lax
from jax.experimental import pallas as pl
from jax.experimental.pallas import tpu as pltpu

NEG_SLOPE = 0.01  # nn.LeakyReLU default


def _leaky_relu(x):
    return jnp.where(x > 0, x, NEG_SLOPE * x)


def _round_up(x, m):
    return (x + m - 1) // m * m


def affine_expr_decoder_kernel(
    x_ref, v_ref,
    w1f_ref, b1f_ref,        # fused layer-1 weights/bias (coeff | bias)
    w2c_ref, b2c_ref,        # coeff decoder layer-2
    w2b_ref, b2b_ref,        # bias  decoder layer-2
    w3f_ref, b3f_ref,        # fused block-diagonal final projection -> 2 cols
    out_ref,
):
    dp = w2c_ref.shape[0]
    tm = x_ref.shape[0]

    x = x_ref[...]                                     # (TM, Dp) bf16

    # ---- layer 1: both decoders fused into one wide matmul ---------------
    h1 = jnp.dot(x, w1f_ref[...], preferred_element_type=jnp.float32)
    h1 = _leaky_relu(h1 + b1f_ref[...])                # (TM, 2Dp) f32
    h1 = h1.astype(w2c_ref.dtype)
    h1c = h1[:, :dp]
    h1b = h1[:, dp:]

    # ---- layer 2: block-diagonal structure -> two matmuls ----------------
    h2c = _leaky_relu(
        jnp.dot(h1c, w2c_ref[...], preferred_element_type=jnp.float32)
        + b2c_ref[...])
    h2b = _leaky_relu(
        jnp.dot(h1b, w2b_ref[...], preferred_element_type=jnp.float32)
        + b2b_ref[...])
    h2 = jnp.concatenate(
        [h2c.astype(w3f_ref.dtype), h2b.astype(w3f_ref.dtype)], axis=-1)

    # ---- fused final projection: column 0 = coeff, column 1 = bias -------
    p = jnp.dot(h2, w3f_ref[...], preferred_element_type=jnp.float32)
    p = p + b3f_ref[...]                               # (TM, 2) f32

    # ---- relayout per-token scalars from sublanes to lanes ---------------
    # The output block is lane-dense (1, TM); extract the "diagonal" of the
    # lane-broadcast column with a select + sublane reduction.
    sub = lax.broadcasted_iota(jnp.int32, (tm, tm), 0)
    lane = lax.broadcasted_iota(jnp.int32, (tm, tm), 1)
    diag = sub == lane
    coeff_row = jnp.sum(jnp.where(diag, p[:, 0:1], 0.0),
                        axis=0, keepdims=True)         # (1, TM)
    bias_row = jnp.sum(jnp.where(diag, p[:, 1:2], 0.0),
                       axis=0, keepdims=True)          # (1, TM)

    v = v_ref[0]                                       # (1, TM) f32
    out_ref[0] = (coeff_row * v + bias_row).astype(out_ref.dtype)


def _pad2(w, rows, cols):
    out = jnp.zeros((rows, cols), jnp.float32)
    return out.at[: w.shape[0], : w.shape[1]].set(w.astype(jnp.float32))


def prepare_params(params, d_model, d_pad, matmul_dtype=jnp.bfloat16):
    """Fuse + zero-pad the two ExprDecoder parameter sets for the kernel."""
    (cw1, cb1, cw2, cb2, cw3, cb3,
     dw1, db1, dw2, db2, dw3, db3) = params

    w1f = jnp.concatenate(
        [_pad2(cw1, d_pad, d_pad), _pad2(dw1, d_pad, d_pad)], axis=1)
    b1f = jnp.concatenate(
        [_pad2(cb1, 1, d_pad), _pad2(db1, 1, d_pad)], axis=1)
    w2c = _pad2(cw2, d_pad, d_pad)
    b2c = _pad2(cb2, 1, d_pad)
    w2b = _pad2(dw2, d_pad, d_pad)
    b2b = _pad2(db2, 1, d_pad)
    # Block-diagonal fused final projection: col 0 <- coeff, col 1 <- bias.
    w3f = jnp.zeros((2 * d_pad, 2), jnp.float32)
    w3f = w3f.at[:d_model, 0].set(cw3[:, 0].astype(jnp.float32))
    w3f = w3f.at[d_pad:d_pad + d_model, 1].set(dw3[:, 0].astype(jnp.float32))
    b3f = jnp.concatenate(
        [cb3.astype(jnp.float32), db3.astype(jnp.float32)], axis=1)  # (1, 2)

    return (w1f.astype(matmul_dtype), b1f,
            w2c.astype(matmul_dtype), b2c,
            w2b.astype(matmul_dtype), b2b,
            w3f.astype(matmul_dtype), b3f)


@functools.partial(jax.jit, static_argnames=("tile_m", "matmul_dtype"))
def affine_expr_decoder(x, values, params, *, tile_m=256,
                        matmul_dtype=jnp.bfloat16):
    """x: (B, S, D) f32, values: (B, S) f32 -> pred (B, S) f32."""
    assert tile_m % 128 == 0, "tile_m must be a multiple of 128 (lane width)"
    B, S, D = x.shape
    N = B * S
    Dp = _round_up(D, 128)
    Np = _round_up(N, tile_m)
    G = Np // tile_m

    # Zero-pad tokens to a multiple of tile_m and features to a multiple of
    # 128 lanes; padding is exact (zero weights/biases in the padded slots).
    x2 = jnp.zeros((Np, Dp), jnp.float32).at[:N, :D].set(x.reshape(N, D))
    x2 = x2.astype(matmul_dtype)
    # Lane-dense values: (G, 1, TM) so each grid step reads a (1, TM) row.
    v2 = jnp.zeros((Np,), jnp.float32).at[:N].set(values.reshape(N))
    v2 = v2.reshape(G, 1, tile_m)

    (w1f, b1f, w2c, b2c, w2b, b2b, w3f, b3f) = prepare_params(
        params, D, Dp, matmul_dtype)

    x_spec = pl.BlockSpec((tile_m, Dp), lambda i: (i, 0))
    v_spec = pl.BlockSpec((1, 1, tile_m), lambda i: (i, 0, 0))
    out_spec = pl.BlockSpec((1, 1, tile_m), lambda i: (i, 0, 0))

    def const2(shape):
        return pl.BlockSpec(shape, lambda i: (0, 0))

    in_specs = [
        x_spec, v_spec,
        const2((Dp, 2 * Dp)), const2((1, 2 * Dp)),
        const2((Dp, Dp)), const2((1, Dp)),
        const2((Dp, Dp)), const2((1, Dp)),
        const2((2 * Dp, 2)), const2((1, 2)),
    ]

    w_bytes = ((w1f.size + w2c.size + w2b.size + w3f.size)
               * w1f.dtype.itemsize
               + (b1f.size + b2c.size + b2b.size + b3f.size) * 4)
    cost = pl.CostEstimate(
        flops=int(Np * (8 * Dp * Dp + 8 * Dp)),
        transcendentals=0,
        bytes_accessed=int(Np * Dp * x2.dtype.itemsize + w_bytes + Np * 4 * 2),
    )

    out = pl.pallas_call(
        affine_expr_decoder_kernel,
        out_shape=jax.ShapeDtypeStruct((G, 1, tile_m), jnp.float32),
        grid_spec=pltpu.PrefetchScalarGridSpec(
            num_scalar_prefetch=0,
            grid=(G,),
            in_specs=in_specs,
            out_specs=out_spec,
        ),
        compiler_params=pltpu.CompilerParams(
            dimension_semantics=("parallel",)),
        cost_estimate=cost,
    )(x2, v2, w1f, b1f, w2c, b2c, w2b, b2b, w3f, b3f)

    return out.reshape(Np)[:N].reshape(B, S)


def init_params(key, d_model):
    """Deterministic synthetic init for two ExprDecoder MLPs (coeff, bias)."""
    keys = jax.random.split(key, 12)
    scale = 1.0 / jnp.sqrt(d_model)

    def lin(kw, kb, din, dout):
        w = jax.random.uniform(kw, (din, dout), jnp.float32, -scale, scale)
        b = jax.random.uniform(kb, (1, dout), jnp.float32, -scale, scale)
        return w, b

    params = []
    ki = 0
    for _dec in range(2):  # coeff decoder, then bias decoder
        w1, b1 = lin(keys[ki], keys[ki + 1], d_model, d_model); ki += 2
        w2, b2 = lin(keys[ki], keys[ki + 1], d_model, d_model); ki += 2
        w3, b3 = lin(keys[ki], keys[ki + 1], d_model, 1); ki += 2
        params += [w1, b1, w2, b2, w3, b3]
    return params


def reference(x, values, params, matmul_dtype=jnp.bfloat16):
    """f32 reference matching the kernel's bf16-input / f32-accumulate math."""
    B, S, D = x.shape
    x2 = x.reshape(-1, D)

    def cast(a):
        return a.astype(matmul_dtype).astype(jnp.float32)

    def mlp(xin, w1, b1, w2, b2, w3, b3):
        h = _leaky_relu(jnp.dot(cast(xin), cast(w1),
                                preferred_element_type=jnp.float32) + b1)
        h = _leaky_relu(jnp.dot(cast(h), cast(w2),
                                preferred_element_type=jnp.float32) + b2)
        return jnp.dot(cast(h), cast(w3),
                       preferred_element_type=jnp.float32) + b3  # (N, 1)

    coeff = mlp(x2, *params[:6]).reshape(B, S)
    bias = mlp(x2, *params[6:]).reshape(B, S)
    return coeff * values + bias


if __name__ == "__main__":
    # TODO(synk): explicit_zero_prob / adaptive_bias / activation / tanh_coeff
    # branches are off in the module's default config and are not implemented.
    B, S, D = 2, 8, 32
    key = jax.random.PRNGKey(0)
    kx, kv, kp = jax.random.split(key, 3)

    x = jax.random.normal(kx, (B, S, D), jnp.float32)
    values = jax.random.normal(kv, (B, S), jnp.float32)
    params = init_params(kp, D)

    out = affine_expr_decoder(x, values, params, tile_m=256)
    out = jax.block_until_ready(out)

    ref = reference(x, values, params)
    assert out.shape == (B, S)
    err = jnp.max(jnp.abs(out - ref))
    assert jnp.allclose(out, ref, atol=2e-3, rtol=2e-3), f"max err {err}"
    print("KERNEL_OK")
</pallas_src>

<mosaic_0001>
module attributes {stable_mosaic.version = 11 : i64} {
  func.func @affine_expr_decoder_kernel(%arg0: i32, %arg1: memref<256x128xbf16, #tpu.memory_space<vmem>>, %arg2: memref<1x1x256xf32, #tpu.memory_space<vmem>>, %arg3: memref<128x256xbf16, #tpu.memory_space<vmem>>, %arg4: memref<1x256xf32, #tpu.memory_space<vmem>>, %arg5: memref<128x128xbf16, #tpu.memory_space<vmem>>, %arg6: memref<1x128xf32, #tpu.memory_space<vmem>>, %arg7: memref<128x128xbf16, #tpu.memory_space<vmem>>, %arg8: memref<1x128xf32, #tpu.memory_space<vmem>>, %arg9: memref<256x2xbf16, #tpu.memory_space<vmem>>, %arg10: memref<1x2xf32, #tpu.memory_space<vmem>>, %arg11: memref<1x1x256xf32, #tpu.memory_space<vmem>>) attributes {dimension_semantics = [#tpu.dimension_semantics<parallel>], iteration_bounds = array<i64: 1>, scalar_prefetch = 0 : i64, scratch_operands = 0 : i64, tpu.core_type = #tpu.core_type<tc>, window_params = [{transform_indices = @transform_0, window_bounds = array<i64: 256, 128>}, {transform_indices = @transform_1, window_bounds = array<i64: 1, 1, 256>}, {pipeline_mode = #tpu.pipeline_mode<synchronous>, transform_indices = @transform_2, window_bounds = array<i64: 128, 256>}, {pipeline_mode = #tpu.pipeline_mode<synchronous>, transform_indices = @transform_3, window_bounds = array<i64: 1, 256>}, {pipeline_mode = #tpu.pipeline_mode<synchronous>, transform_indices = @transform_4, window_bounds = array<i64: 128, 128>}, {pipeline_mode = #tpu.pipeline_mode<synchronous>, transform_indices = @transform_5, window_bounds = array<i64: 1, 128>}, {pipeline_mode = #tpu.pipeline_mode<synchronous>, transform_indices = @transform_6, window_bounds = array<i64: 128, 128>}, {pipeline_mode = #tpu.pipeline_mode<synchronous>, transform_indices = @transform_7, window_bounds = array<i64: 1, 128>}, {pipeline_mode = #tpu.pipeline_mode<synchronous>, transform_indices = @transform_8, window_bounds = array<i64: 256, 2>}, {pipeline_mode = #tpu.pipeline_mode<synchronous>, transform_indices = @transform_9, window_bounds = array<i64: 1, 2>}, {transform_indices = @transform_10, window_bounds = array<i64: 1, 1, 256>}]} {
    %c0 = arith.constant 0 : index
    %c0_0 = arith.constant 0 : index
    %0 = vector.load %arg1[%c0, %c0_0] : memref<256x128xbf16, #tpu.memory_space<vmem>>, vector<256x128xbf16>
    %c0_1 = arith.constant 0 : index
    %c0_2 = arith.constant 0 : index
    %1 = vector.load %arg3[%c0_1, %c0_2] : memref<128x256xbf16, #tpu.memory_space<vmem>>, vector<128x256xbf16>
    %cst = arith.constant dense<0.000000e+00> : vector<256x256xf32>
    %2 = tpu.matmul %0, %1, %cst {dimension_numbers = #tpu.dot_dimension_numbers<[1], [0], [0], [1], [0, 0, 1, 1], [], []>} : vector<256x128xbf16>, vector<128x256xbf16>, vector<256x256xf32> -> vector<256x256xf32>
    %c0_3 = arith.constant 0 : index
    %c0_4 = arith.constant 0 : index
    %3 = vector.load %arg4[%c0_3, %c0_4] : memref<1x256xf32, #tpu.memory_space<vmem>>, vector<1x256xf32>
    %4 = vector.broadcast %3 : vector<1x256xf32> to vector<256x256xf32>
    %5 = arith.addf %2, %4 : vector<256x256xf32>
    %cst_5 = arith.constant 0.000000e+00 : f32
    %6 = vector.broadcast %cst_5 : f32 to vector<256x256xf32>
    %7 = arith.cmpf ogt, %5, %6 : vector<256x256xf32>
    %cst_6 = arith.constant 0.00999999977 : f32
    %8 = vector.broadcast %cst_6 : f32 to vector<256x256xf32>
    %9 = arith.mulf %8, %5 : vector<256x256xf32>
    %10 = arith.select %7, %5, %9 : vector<256x256xi1>, vector<256x256xf32>
    %11 = arith.truncf %10 : vector<256x256xf32> to vector<256x256xbf16>
    %12 = vector.extract_strided_slice %11 {offsets = [0, 0], sizes = [256, 128], strides = [1, 1]} : vector<256x256xbf16> to vector<256x128xbf16>
    %13 = vector.extract_strided_slice %11 {offsets = [0, 128], sizes = [256, 128], strides = [1, 1]} : vector<256x256xbf16> to vector<256x128xbf16>
    %c0_7 = arith.constant 0 : index
    %c0_8 = arith.constant 0 : index
    %14 = vector.load %arg5[%c0_7, %c0_8] : memref<128x128xbf16, #tpu.memory_space<vmem>>, vector<128x128xbf16>
    %cst_9 = arith.constant dense<0.000000e+00> : vector<256x128xf32>
    %15 = tpu.matmul %12, %14, %cst_9 {dimension_numbers = #tpu.dot_dimension_numbers<[1], [0], [0], [1], [0, 0, 1, 1], [], []>} : vector<256x128xbf16>, vector<128x128xbf16>, vector<256x128xf32> -> vector<256x128xf32>
    %c0_10 = arith.constant 0 : index
    %c0_11 = arith.constant 0 : index
    %16 = vector.load %arg6[%c0_10, %c0_11] : memref<1x128xf32, #tpu.memory_space<vmem>>, vector<1x128xf32>
    %17 = vector.broadcast %16 : vector<1x128xf32> to vector<256x128xf32>
    %18 = arith.addf %15, %17 : vector<256x128xf32>
    %cst_12 = arith.constant 0.000000e+00 : f32
    %19 = vector.broadcast %cst_12 : f32 to vector<256x128xf32>
    %20 = arith.cmpf ogt, %18, %19 : vector<256x128xf32>
    %cst_13 = arith.constant 0.00999999977 : f32
    %21 = vector.broadcast %cst_13 : f32 to vector<256x128xf32>
    %22 = arith.mulf %21, %18 : vector<256x128xf32>
    %23 = arith.select %20, %18, %22 : vector<256x128xi1>, vector<256x128xf32>
    %c0_14 = arith.constant 0 : index
    %c0_15 = arith.constant 0 : index
    %24 = vector.load %arg7[%c0_14, %c0_15] : memref<128x128xbf16, #tpu.memory_space<vmem>>, vector<128x128xbf16>
    %cst_16 = arith.constant dense<0.000000e+00> : vector<256x128xf32>
    %25 = tpu.matmul %13, %24, %cst_16 {dimension_numbers = #tpu.dot_dimension_numbers<[1], [0], [0], [1], [0, 0, 1, 1], [], []>} : vector<256x128xbf16>, vector<128x128xbf16>, vector<256x128xf32> -> vector<256x128xf32>
    %c0_17 = arith.constant 0 : index
    %c0_18 = arith.constant 0 : index
    %26 = vector.load %arg8[%c0_17, %c0_18] : memref<1x128xf32, #tpu.memory_space<vmem>>, vector<1x128xf32>
    %27 = vector.broadcast %26 : vector<1x128xf32> to vector<256x128xf32>
    %28 = arith.addf %25, %27 : vector<256x128xf32>
    %cst_19 = arith.constant 0.000000e+00 : f32
    %29 = vector.broadcast %cst_19 : f32 to vector<256x128xf32>
    %30 = arith.cmpf ogt, %28, %29 : vector<256x128xf32>
    %cst_20 = arith.constant 0.00999999977 : f32
    %31 = vector.broadcast %cst_20 : f32 to vector<256x128xf32>
    %32 = arith.mulf %31, %28 : vector<256x128xf32>
    %33 = arith.select %30, %28, %32 : vector<256x128xi1>, vector<256x128xf32>
    %34 = arith.truncf %23 : vector<256x128xf32> to vector<256x128xbf16>
    %35 = arith.truncf %33 : vector<256x128xf32> to vector<256x128xbf16>
    %36 = tpu.concatenate %34, %35 in 1 : vector<256x128xbf16>, vector<256x128xbf16> -> vector<256x256xbf16>
    %c0_21 = arith.constant 0 : index
    %c0_22 = arith.constant 0 : index
    %37 = vector.load %arg9[%c0_21, %c0_22] : memref<256x2xbf16, #tpu.memory_space<vmem>>, vector<256x2xbf16>
    %cst_23 = arith.constant dense<0.000000e+00> : vector<256x2xf32>
    %38 = tpu.matmul %36, %37, %cst_23 {dimension_numbers = #tpu.dot_dimension_numbers<[1], [0], [0], [1], [0, 0, 1, 1], [], []>} : vector<256x256xbf16>, vector<256x2xbf16>, vector<256x2xf32> -> vector<256x2xf32>
    %c0_24 = arith.constant 0 : index
    %c0_25 = arith.constant 0 : index
    %39 = vector.load %arg10[%c0_24, %c0_25] : memref<1x2xf32, #tpu.memory_space<vmem>>, vector<1x2xf32>
    %40 = vector.broadcast %39 : vector<1x2xf32> to vector<256x2xf32>
    %41 = arith.addf %38, %40 : vector<256x2xf32>
    %42 = tpu.iota {dimensions = array<i32: 0>} : vector<256x256xi32>
    %43 = tpu.iota {dimensions = array<i32: 1>} : vector<256x256xi32>
    %44 = arith.cmpi eq, %42, %43 : vector<256x256xi32>
    %45 = vector.extract_strided_slice %41 {offsets = [0, 0], sizes = [256, 1], strides = [1, 1]} : vector<256x2xf32> to vector<256x1xf32>
    %cst_26 = arith.constant 0.000000e+00 : f32
    %46 = vector.shape_cast %45 : vector<256x1xf32> to vector<256x1xf32>
    %47 = vector.broadcast %46 : vector<256x1xf32> to vector<256x256xf32>
    %48 = vector.broadcast %cst_26 : f32 to vector<256x256xf32>
    %49 = arith.select %44, %47, %48 : vector<256x256xi1>, vector<256x256xf32>
    %cst_27 = arith.constant dense<0.000000e+00> : vector<256xf32>
    %50 = vector.multi_reduction <add>, %49, %cst_27 [0] : vector<256x256xf32> to vector<256xf32>
    %51 = vector.shape_cast %50 : vector<256xf32> to vector<1x256xf32>
    %52 = vector.extract_strided_slice %41 {offsets = [0, 1], sizes = [256, 1], strides = [1, 1]} : vector<256x2xf32> to vector<256x1xf32>
    %cst_28 = arith.constant 0.000000e+00 : f32
    %53 = vector.shape_cast %52 : vector<256x1xf32> to vector<256x1xf32>
    %54 = vector.broadcast %53 : vector<256x1xf32> to vector<256x256xf32>
    %55 = vector.broadcast %cst_28 : f32 to vector<256x256xf32>
    %56 = arith.select %44, %54, %55 : vector<256x256xi1>, vector<256x256xf32>
    %cst_29 = arith.constant dense<0.000000e+00> : vector<256xf32>
    %57 = vector.multi_reduction <add>, %56, %cst_29 [0] : vector<256x256xf32> to vector<256xf32>
    %58 = vector.shape_cast %57 : vector<256xf32> to vector<1x256xf32>
    %c0_30 = arith.constant 0 : index
    %c0_31 = arith.constant 0 : index
    %c0_32 = arith.constant 0 : index
    %59 = vector.load %arg2[%c0_30, %c0_31, %c0_32] : memref<1x1x256xf32, #tpu.memory_space<vmem>>, vector<1x1x256xf32>
    %60 = vector.shape_cast %59 : vector<1x1x256xf32> to vector<1x256xf32>
    %61 = arith.mulf %51, %60 : vector<1x256xf32>
    %62 = arith.addf %61, %58 : vector<1x256xf32>
    %c0_33 = arith.constant 0 : index
    %c0_34 = arith.constant 0 : index
    %c0_35 = arith.constant 0 : index
    %63 = vector.load %arg11[%c0_33, %c0_34, %c0_35] : memref<1x1x256xf32, #tpu.memory_space<vmem>>, vector<1x1x256xf32>
    %64 = vector.shape_cast %63 : vector<1x1x256xf32> to vector<1x256xf32>
    %65 = vector.shape_cast %62 : vector<1x256xf32> to vector<1x1x256xf32>
    tpu.vector_store %arg11[%c0_33, %c0_34, %c0_35], %65 {strides = array<i32>} : memref<1x1x256xf32, #tpu.memory_space<vmem>>, vector<1x1x256xf32>,
    return
  }
  func.func @transform_0(%arg0: i32) -> (i32, i32) {
    %c0_i32 = arith.constant 0 : i32
    %c0_i32_0 = arith.constant 0 : i32
    return %arg0, %c0_i32 : i32, i32
  }
  func.func @transform_1(%arg0: i32) -> (i32, i32, i32) {
    %c0_i32 = arith.constant 0 : i32
    %c0_i32_0 = arith.constant 0 : i32
    %c0_i32_1 = arith.constant 0 : i32
    return %arg0, %c0_i32, %c0_i32_0 : i32, i32, i32
  }
  func.func @transform_2(%arg0: i32) -> (i32, i32) {
    %c0_i32 = arith.constant 0 : i32
    %c0_i32_0 = arith.constant 0 : i32
    %c0_i32_1 = arith.constant 0 : i32
    return %c0_i32, %c0_i32_0 : i32, i32
  }
  func.func @transform_3(%arg0: i32) -> (i32, i32) {
    %c0_i32 = arith.constant 0 : i32
    %c0_i32_0 = arith.constant 0 : i32
    %c0_i32_1 = arith.constant 0 : i32
    return %c0_i32, %c0_i32_0 : i32, i32
  }
  func.func @transform_4(%arg0: i32) -> (i32, i32) {
    %c0_i32 = arith.constant 0 : i32
    %c0_i32_0 = arith.constant 0 : i32
    %c0_i32_1 = arith.constant 0 : i32
    return %c0_i32, %c0_i32_0 : i32, i32
  }
  func.func @transform_5(%arg0: i32) -> (i32, i32) {
    %c0_i32 = arith.constant 0 : i32
    %c0_i32_0 = arith.constant 0 : i32
    %c0_i32_1 = arith.constant 0 : i32
    return %c0_i32, %c0_i32_0 : i32, i32
  }
  func.func @transform_6(%arg0: i32) -> (i32, i32) {
    %c0_i32 = arith.constant 0 : i32
    %c0_i32_0 = arith.constant 0 : i32
    %c0_i32_1 = arith.constant 0 : i32
    return %c0_i32, %c0_i32_0 : i32, i32
  }
  func.func @transform_7(%arg0: i32) -> (i32, i32) {
    %c0_i32 = arith.constant 0 : i32
    %c0_i32_0 = arith.constant 0 : i32
    %c0_i32_1 = arith.constant 0 : i32
    return %c0_i32, %c0_i32_0 : i32, i32
  }
  func.func @transform_8(%arg0: i32) -> (i32, i32) {
    %c0_i32 = arith.constant 0 : i32
    %c0_i32_0 = arith.constant 0 : i32
    %c0_i32_1 = arith.constant 0 : i32
    return %c0_i32, %c0_i32_0 : i32, i32
  }
  func.func @transform_9(%arg0: i32) -> (i32, i32) {
    %c0_i32 = arith.constant 0 : i32
    %c0_i32_0 = arith.constant 0 : i32
    %c0_i32_1 = arith.constant 0 : i32
    return %c0_i32, %c0_i32_0 : i32, i32
  }
  func.func @transform_10(%arg0: i32) -> (i32, i32, i32) {
    %c0_i32 = arith.constant 0 : i32
    %c0_i32_0 = arith.constant 0 : i32
    %c0_i32_1 = arith.constant 0 : i32
    return %arg0, %c0_i32, %c0_i32_0 : i32, i32, i32
  }
}

</mosaic_0001>

<llo_original>
// kernel: affine_expr_decoder.1
$region0: #{affine_expr_decoder.1}
  #allocation0 [shape = 'u32[]', space=smem, size = 0x4, offset = 0x4, fixed_abs, tag = 'smem constant byte address 0x4 - core index']
  #allocation1 [shape = 'u32[144,128]{1,0:T(1,128)}', space=vmem, size = 0x12000, scoped, tag = 'internal scratch']
  %s0 = inlined_call_operand.vmem [shape: bf16[256,128], index: 0, kind: input, shape index: {}]
  %s1 = inlined_call_operand.vmem [shape: f32[1,1,256], index: 1, kind: input, shape index: {}]
  %s2 = inlined_call_operand.vmem [shape: bf16[128,256], index: 2, kind: input, shape index: {}]
  %s3 = inlined_call_operand.vmem [shape: f32[1,256], index: 3, kind: input, shape index: {}]
  %s4 = inlined_call_operand.vmem [shape: bf16[128,128], index: 4, kind: input, shape index: {}]
  %s5 = inlined_call_operand.vmem [shape: f32[1,128], index: 5, kind: input, shape index: {}]
  %s6 = inlined_call_operand.vmem [shape: bf16[128,128], index: 6, kind: input, shape index: {}]
  %s7 = inlined_call_operand.vmem [shape: f32[1,128], index: 7, kind: input, shape index: {}]
  %s8 = inlined_call_operand.vmem [shape: bf16[256,2], index: 8, kind: input, shape index: {}]
  %s9 = inlined_call_operand.vmem [shape: f32[1,2], index: 9, kind: input, shape index: {}]
  %s10 = inlined_call_operand.vmem [shape: f32[1,1,256], index: 10, kind: output, shape index: {}]
  %s11 = sld [smem:[#allocation0]]
  $region50: #{affine_expr_decoder.1} parent=0
    _
  %s13 = ssub.s32 1, %s11
  %s14 = scalar_select 0, %s13, %s11
  // Predicated region
  $region2: #{affine_expr_decoder.1} parent=0 // pred_check
    _
  $region3: #{affine_expr_decoder.1} parent=0 // pred_check_branch
    %16 = sbr.rel (0) target = $region5
  $region4: #{affine_expr_decoder.1} parent=0 // pred_region
    _
  $region5: #{affine_expr_decoder.1} parent=0 // pred_fallthru
    _
  // Predicated region
  $region6: #{affine_expr_decoder.1} parent=0 // pred_check
    _
  $region7: #{affine_expr_decoder.1} parent=0 // pred_check_branch
    %18 = sbr.rel (0) target = $region9
  $region8: #{affine_expr_decoder.1} parent=0 // pred_region
    _
  $region9: #{affine_expr_decoder.1} parent=0 // pred_fallthru
    _
  // Predicated region
  $region10: #{affine_expr_decoder.1} parent=0 // pred_check
    _
  $region11: #{affine_expr_decoder.1} parent=0 // pred_check_branch
    %20 = sbr.rel (0) target = $region13
  $region12: #{affine_expr_decoder.1} parent=0 // pred_region
    _
  $region13: #{affine_expr_decoder.1} parent=0 // pred_fallthru
    _
  // Predicated region
  $region14: #{affine_expr_decoder.1} parent=0 // pred_check
    _
  $region15: #{affine_expr_decoder.1} parent=0 // pred_check_branch
    %22 = sbr.rel (0) target = $region17
  $region16: #{affine_expr_decoder.1} parent=0 // pred_region
    _
  $region17: #{affine_expr_decoder.1} parent=0 // pred_fallthru
    _
  // Predicated region
  $region18: #{affine_expr_decoder.1} parent=0 // pred_check
    _
  $region19: #{affine_expr_decoder.1} parent=0 // pred_check_branch
    %24 = sbr.rel (0) target = $region21
  $region20: #{affine_expr_decoder.1} parent=0 // pred_region
    _
  $region21: #{affine_expr_decoder.1} parent=0 // pred_fallthru
    _
  // Predicated region
  $region22: #{affine_expr_decoder.1} parent=0 // pred_check
    _
  $region23: #{affine_expr_decoder.1} parent=0 // pred_check_branch
    %26 = sbr.rel (0) target = $region25
  $region24: #{affine_expr_decoder.1} parent=0 // pred_region
    _
  $region25: #{affine_expr_decoder.1} parent=0 // pred_fallthru
    _
  // Predicated region
  $region26: #{affine_expr_decoder.1} parent=0 // pred_check
    _
  $region27: #{affine_expr_decoder.1} parent=0 // pred_check_branch
    %28 = sbr.rel (0) target = $region29
  $region28: #{affine_expr_decoder.1} parent=0 // pred_region
    _
  $region29: #{affine_expr_decoder.1} parent=0 // pred_fallthru
    _
  // Predicated region
  $region30: #{affine_expr_decoder.1} parent=0 // pred_check
    _
  $region31: #{affine_expr_decoder.1} parent=0 // pred_check_branch
    %30 = sbr.rel (0) target = $region33
  $region32: #{affine_expr_decoder.1} parent=0 // pred_region
    _
  $region33: #{affine_expr_decoder.1} parent=0 // pred_fallthru
    _
  // Predicated region
  $region34: #{affine_expr_decoder.1} parent=0 // pred_check
    _
  $region35: #{affine_expr_decoder.1} parent=0 // pred_check_branch
    %32 = sbr.rel (0) target = $region37
  $region36: #{affine_expr_decoder.1} parent=0 // pred_region
    _
  $region37: #{affine_expr_decoder.1} parent=0 // pred_fallthru
    _
  // Predicated region
  $region38: #{affine_expr_decoder.1} parent=0 // pred_check
    _
  $region39: #{affine_expr_decoder.1} parent=0 // pred_check_branch
    %34 = sbr.rel (0) target = $region41
  $region40: #{affine_expr_decoder.1} parent=0 // pred_region
    _
  $region41: #{affine_expr_decoder.1} parent=0 // pred_fallthru
    _
  %v36 = vld [vmem:[%s0] sm:$0xf]
  %v37 = vld [vmem:[%s0 + $0x4] sm:$0xf]
  %v38 = vld [vmem:[%s0 + $0x8] sm:$0xf]
  %v39 = vld [vmem:[%s0 + $0xc] sm:$0xf]
  %v40 = vld [vmem:[%s0 + $0x10] sm:$0xf]
  %v41 = vld [vmem:[%s0 + $0x14] sm:$0xf]
  %v42 = vld [vmem:[%s0 + $0x18] sm:$0xf]
  %v43 = vld [vmem:[%s0 + $0x1c] sm:$0xf]
  %v44 = vld [vmem:[%s0 + $0x20] sm:$0xf]
  %v45 = vld [vmem:[%s0 + $0x24] sm:$0xf]
  %v46 = vld [vmem:[%s0 + $0x28] sm:$0xf]
  %v47 = vld [vmem:[%s0 + $0x2c] sm:$0xf]
  %v48 = vld [vmem:[%s0 + $0x30] sm:$0xf]
  %v49 = vld [vmem:[%s0 + $0x34] sm:$0xf]
  %v50 = vld [vmem:[%s0 + $0x38] sm:$0xf]
  %v51 = vld [vmem:[%s0 + $0x3c] sm:$0xf]
  %v52 = vld [vmem:[%s0 + $0x40] sm:$0xf]
  %v53 = vld [vmem:[%s0 + $0x44] sm:$0xf]
  %v54 = vld [vmem:[%s0 + $0x48] sm:$0xf]
  %v55 = vld [vmem:[%s0 + $0x4c] sm:$0xf]
  %v56 = vld [vmem:[%s0 + $0x50] sm:$0xf]
  %v57 = vld [vmem:[%s0 + $0x54] sm:$0xf]
  %v58 = vld [vmem:[%s0 + $0x58] sm:$0xf]
  %v59 = vld [vmem:[%s0 + $0x5c] sm:$0xf]
  %v60 = vld [vmem:[%s0 + $0x60] sm:$0xf]
  %v61 = vld [vmem:[%s0 + $0x64] sm:$0xf]
  %v62 = vld [vmem:[%s0 + $0x68] sm:$0xf]
  %v63 = vld [vmem:[%s0 + $0x6c] sm:$0xf]
  %v64 = vld [vmem:[%s0 + $0x70] sm:$0xf]
  %v65 = vld [vmem:[%s0 + $0x74] sm:$0xf]
  %v66 = vld [vmem:[%s0 + $0x78] sm:$0xf]
  %v67 = vld [vmem:[%s0 + $0x7c] sm:$0xf]
  %v68 = vld [vmem:[%s2] sm:$0xff]
  %v69 = vld [vmem:[%s2 + $0x8] sm:$0xff]
  %v70 = vld [vmem:[%s2 + $0x10] sm:$0xff]
  %v71 = vld [vmem:[%s2 + $0x18] sm:$0xff]
  %v72 = vld [vmem:[%s2 + $0x20] sm:$0xff]
  %v73 = vld [vmem:[%s2 + $0x28] sm:$0xff]
  %v74 = vld [vmem:[%s2 + $0x30] sm:$0xff]
  %v75 = vld [vmem:[%s2 + $0x38] sm:$0xff]
  %v76 = vld [vmem:[%s2 + $0x40] sm:$0xff]
  %v77 = vld [vmem:[%s2 + $0x48] sm:$0xff]
  %v78 = vld [vmem:[%s2 + $0x50] sm:$0xff]
  %v79 = vld [vmem:[%s2 + $0x58] sm:$0xff]
  %v80 = vld [vmem:[%s2 + $0x60] sm:$0xff]
  %v81 = vld [vmem:[%s2 + $0x68] sm:$0xff]
  %v82 = vld [vmem:[%s2 + $0x70] sm:$0xff]
  %v83 = vld [vmem:[%s2 + $0x78] sm:$0xff]
  %v84 = vld [vmem:[%s3] sm:$0x3]
  %v86 = vlaneseq
  %v87 = vshrl.u32 %v86, 7
  %v88 = vsub.s32 0, %v87
  %v89 = vrot.slane %v84, %v88
  %v90 = vlaneseq
  %v91 = vshrl.u32 %v90, 7
  %v92 = vsub.s32 1, %v91
  %v93 = vrot.slane %v84, %v92
  %v128 = vunpack.c.l.b16 %v36
  %v129 = vunpack.c.l.b16 %v37
  %v130 = vunpack.c.l.b16 %v38
  %v131 = vunpack.c.l.b16 %v39
  %v132 = vunpack.c.l.b16 %v40
  %v133 = vunpack.c.l.b16 %v41
  %v134 = vunpack.c.l.b16 %v42
  %v135 = vunpack.c.l.b16 %v43
  %v136 = vunpack.c.l.b16 %v44
  %v137 = vunpack.c.l.b16 %v45
  %v138 = vunpack.c.l.b16 %v46
  %v139 = vunpack.c.l.b16 %v47
  %v140 = vunpack.c.l.b16 %v48
  %v141 = vunpack.c.l.b16 %v49
  %v142 = vunpack.c.l.b16 %v50
  %v143 = vunpack.c.l.b16 %v51
  %v144 = vunpack.c.l.b16 %v52
  %v145 = vunpack.c.l.b16 %v53
  %v146 = vunpack.c.l.b16 %v54
  %v147 = vunpack.c.l.b16 %v55
  %v148 = vunpack.c.l.b16 %v56
  %v149 = vunpack.c.l.b16 %v57
  %v150 = vunpack.c.l.b16 %v58
  %v151 = vunpack.c.l.b16 %v59
  %v152 = vunpack.c.l.b16 %v60
  %v153 = vunpack.c.l.b16 %v61
  %v154 = vunpack.c.l.b16 %v62
  %v155 = vunpack.c.l.b16 %v63
  %v156 = vunpack.c.l.b16 %v64
  %v157 = vunpack.c.l.b16 %v65
  %v158 = vunpack.c.l.b16 %v66
  %v159 = vunpack.c.l.b16 %v67
  %v160 = vpack.c.b16 %v129, %v128
  %v161 = vpack.c.b16 %v131, %v130
  %v162 = vpack.c.b16 %v133, %v132
  %v163 = vpack.c.b16 %v135, %v134
  %v164 = vpack.c.b16 %v137, %v136
  %v165 = vpack.c.b16 %v139, %v138
  %v166 = vpack.c.b16 %v141, %v140
  %v167 = vpack.c.b16 %v143, %v142
  %v168 = vpack.c.b16 %v145, %v144
  %v169 = vpack.c.b16 %v147, %v146
  %v170 = vpack.c.b16 %v149, %v148
  %v171 = vpack.c.b16 %v151, %v150
  %v172 = vpack.c.b16 %v153, %v152
  %v173 = vpack.c.b16 %v155, %v154
  %v174 = vpack.c.b16 %v157, %v156
  %v175 = vpack.c.b16 %v159, %v158
  %v208 = vunpack.c.l.b16 %v68
  %v209 = vunpack.c.h.b16 %v68
  %v210 = vunpack.c.l.b16 %v69
  %v211 = vunpack.c.h.b16 %v69
  %v212 = vunpack.c.l.b16 %v70
  %v213 = vunpack.c.h.b16 %v70
  %v214 = vunpack.c.l.b16 %v71
  %v215 = vunpack.c.h.b16 %v71
  %v216 = vunpack.c.l.b16 %v72
  %v217 = vunpack.c.h.b16 %v72
  %v218 = vunpack.c.l.b16 %v73
  %v219 = vunpack.c.h.b16 %v73
  %v220 = vunpack.c.l.b16 %v74
  %v221 = vunpack.c.h.b16 %v74
  %v222 = vunpack.c.l.b16 %v75
  %v223 = vunpack.c.h.b16 %v75
  %v224 = vunpack.c.l.b16 %v76
  %v225 = vunpack.c.h.b16 %v76
  %v226 = vunpack.c.l.b16 %v77
  %v227 = vunpack.c.h.b16 %v77
  %v228 = vunpack.c.l.b16 %v78
  %v229 = vunpack.c.h.b16 %v78
  %v230 = vunpack.c.l.b16 %v79
  %v231 = vunpack.c.h.b16 %v79
  %v232 = vunpack.c.l.b16 %v80
  %v233 = vunpack.c.h.b16 %v80
  %v234 = vunpack.c.l.b16 %v81
  %v235 = vunpack.c.h.b16 %v81
  %v236 = vunpack.c.l.b16 %v82
  %v237 = vunpack.c.h.b16 %v82
  %v238 = vunpack.c.l.b16 %v83
  %v239 = vunpack.c.h.b16 %v83
  %v240 = vpack.c.b16 %v210, %v208
  %v241 = vpack.c.b16 %v211, %v209
  %v242 = vpack.c.b16 %v214, %v212
  %v243 = vpack.c.b16 %v215, %v213
  %v244 = vpack.c.b16 %v218, %v216
  %v245 = vpack.c.b16 %v219, %v217
  %v246 = vpack.c.b16 %v222, %v220
  %v247 = vpack.c.b16 %v223, %v221
  %v248 = vpack.c.b16 %v226, %v224
  %v249 = vpack.c.b16 %v227, %v225
  %v250 = vpack.c.b16 %v230, %v228
  %v251 = vpack.c.b16 %v231, %v229
  %v252 = vpack.c.b16 %v234, %v232
  %v253 = vpack.c.b16 %v235, %v233
  %v254 = vpack.c.b16 %v238, %v236
  %v255 = vpack.c.b16 %v239, %v237
  %272 = vmatprep.subr.bf16.mxu0 %v241
  %273 = vmatpush1.bf16.msra.mxu0 %v240
  %274 = vmatprep.subr.bf16.mxu0 %v243
  %275 = vmatpush1.bf16.msra.mxu0 %v242
  %276 = vmatprep.subr.bf16.mxu0 %v245
  %277 = vmatpush1.bf16.msra.mxu0 %v244
  %278 = vmatprep.subr.bf16.mxu0 %v247
  %279 = vmatpush1.bf16.msra.mxu0 %v246
  %280 = vmatprep.subr.bf16.mxu0 %v249
  %281 = vmatpush1.bf16.msra.mxu0 %v248
  %282 = vmatprep.subr.bf16.mxu0 %v251
  %283 = vmatpush1.bf16.msra.mxu0 %v250
  %284 = vmatprep.subr.bf16.mxu0 %v253
  %285 = vmatpush1.bf16.msra.mxu0 %v252
  %286 = vmatprep.subr.bf16.mxu0 %v255
  %287 = vmatpush1.bf16.msra.mxu0 %v254
  %288 = vmatprep.subr.bf16.mxu0 0
  %289 = vmatpush1.bf16.msra.mxu0 0
  %290 = vmatprep.subr.bf16.mxu0 0
  %291 = vmatpush1.bf16.msra.mxu0 0
  %292 = vmatprep.subr.bf16.mxu0 0
  %293 = vmatpush1.bf16.msra.mxu0 0
  %294 = vmatprep.subr.bf16.mxu0 0
  %295 = vmatpush1.bf16.msra.mxu0 0
  %296 = vmatprep.subr.bf16.mxu0 0
  %297 = vmatpush1.bf16.msra.mxu0 0
  %298 = vmatprep.subr.bf16.mxu0 0
  %299 = vmatpush1.bf16.msra.mxu0 0
  %300 = vmatprep.subr.bf16.mxu0 0
  %301 = vmatpush1.bf16.msra.mxu0 0
  %302 = vmatprep.subr.bf16.mxu0 0
  %303 = vmatpush1.bf16.msra.mxu0 0
  %304 = vmatprep.mubr.bf16.mxu0 0
  %305 = vmatmul.mubr.bf16.gmra.mrb[0].mxu0 %v160
  %v306 = vpop.f32.mrb[0].mxu0
  %v307 = vadd.f32 %v89, %v306
  %v308 = vpop.f32.mrb[0].mxu0
  %v309 = vadd.f32 %v93, %v308
  %v310 = vpop.f32.mrb[0].mxu0
  %v311 = vadd.f32 %v89, %v310
  %v312 = vpop.f32.mrb[0].mxu0
  %v313 = vadd.f32 %v93, %v312
  %314 = vmatprep.mubr.bf16.mxu0 0
  %315 = vmatmul.mubr.bf16.gmra.mrb[0].mxu0 %v161
  %v316 = vpop.f32.mrb[0].mxu0
  %v317 = vadd.f32 %v89, %v316
  %v318 = vpop.f32.mrb[0].mxu0
  %v319 = vadd.f32 %v93, %v318
  %v320 = vpop.f32.mrb[0].mxu0
  %v321 = vadd.f32 %v89, %v320
  %v322 = vpop.f32.mrb[0].mxu0
  %v323 = vadd.f32 %v93, %v322
  %324 = vmatprep.mubr.bf16.mxu0 0
  %325 = vmatmul.mubr.bf16.gmra.mrb[0].mxu0 %v162
  %v326 = vpop.f32.mrb[0].mxu0
  %v327 = vadd.f32 %v89, %v326
  %v328 = vpop.f32.mrb[0].mxu0
  %v329 = vadd.f32 %v93, %v328
  %v330 = vpop.f32.mrb[0].mxu0
  %v331 = vadd.f32 %v89, %v330
  %v332 = vpop.f32.mrb[0].mxu0
  %v333 = vadd.f32 %v93, %v332
  %334 = vmatprep.mubr.bf16.mxu0 0
  %335 = vmatmul.mubr.bf16.gmra.mrb[0].mxu0 %v163
  %v336 = vpop.f32.mrb[0].mxu0
  %v337 = vadd.f32 %v89, %v336
  %v338 = vpop.f32.mrb[0].mxu0
  %v339 = vadd.f32 %v93, %v338
  %v340 = vpop.f32.mrb[0].mxu0
  %v341 = vadd.f32 %v89, %v340
  %v342 = vpop.f32.mrb[0].mxu0
  %v343 = vadd.f32 %v93, %v342
  %344 = vmatprep.mubr.bf16.mxu0 0
  %345 = vmatmul.mubr.bf16.gmra.mrb[0].mxu0 %v164
  %v346 = vpop.f32.mrb[0].mxu0
  %v347 = vadd.f32 %v89, %v346
  %v348 = vpop.f32.mrb[0].mxu0
  %v349 = vadd.f32 %v93, %v348
  %v350 = vpop.f32.mrb[0].mxu0
  %v351 = vadd.f32 %v89, %v350
  %v352 = vpop.f32.mrb[0].mxu0
  %v353 = vadd.f32 %v93, %v352
  %354 = vmatprep.mubr.bf16.mxu0 0
  %355 = vmatmul.mubr.bf16.gmra.mrb[0].mxu0 %v165
  %v356 = vpop.f32.mrb[0].mxu0
  %v357 = vadd.f32 %v89, %v356
  %v358 = vpop.f32.mrb[0].mxu0
  %v359 = vadd.f32 %v93, %v358
  %v360 = vpop.f32.mrb[0].mxu0
  %v361 = vadd.f32 %v89, %v360
  %v362 = vpop.f32.mrb[0].mxu0
  %v363 = vadd.f32 %v93, %v362
  %364 = vmatprep.mubr.bf16.mxu0 0
  %365 = vmatmul.mubr.bf16.gmra.mrb[0].mxu0 %v166
  %v366 = vpop.f32.mrb[0].mxu0
  %v367 = vadd.f32 %v89, %v366
  %v368 = vpop.f32.mrb[0].mxu0
  %v369 = vadd.f32 %v93, %v368
  %v370 = vpop.f32.mrb[0].mxu0
  %v371 = vadd.f32 %v89, %v370
  %v372 = vpop.f32.mrb[0].mxu0
  %v373 = vadd.f32 %v93, %v372
  %374 = vmatprep.mubr.bf16.mxu0 0
  %375 = vmatmul.mubr.bf16.gmra.mrb[0].mxu0 %v167
  %v376 = vpop.f32.mrb[0].mxu0
  %v377 = vadd.f32 %v89, %v376
  %v378 = vpop.f32.mrb[0].mxu0
  %v379 = vadd.f32 %v93, %v378
  %v380 = vpop.f32.mrb[0].mxu0
  %v381 = vadd.f32 %v89, %v380
  %v382 = vpop.f32.mrb[0].mxu0
  %v383 = vadd.f32 %v93, %v382
  %384 = vmatprep.mubr.bf16.mxu0 0
  %385 = vmatmul.mubr.bf16.gmra.mrb[0].mxu0 %v168
  %v386 = vpop.f32.mrb[0].mxu0
  %v387 = vadd.f32 %v89, %v386
  %v388 = vpop.f32.mrb[0].mxu0
  %v389 = vadd.f32 %v93, %v388
  %v390 = vpop.f32.mrb[0].mxu0
  %v391 = vadd.f32 %v89, %v390
  %v392 = vpop.f32.mrb[0].mxu0
  %v393 = vadd.f32 %v93, %v392
  %394 = vmatprep.mubr.bf16.mxu0 0
  %395 = vmatmul.mubr.bf16.gmra.mrb[0].mxu0 %v169
  %v396 = vpop.f32.mrb[0].mxu0
  %v397 = vadd.f32 %v89, %v396
  %v398 = vpop.f32.mrb[0].mxu0
  %v399 = vadd.f32 %v93, %v398
  %v400 = vpop.f32.mrb[0].mxu0
  %v401 = vadd.f32 %v89, %v400
  %v402 = vpop.f32.mrb[0].mxu0
  %v403 = vadd.f32 %v93, %v402
  %404 = vmatprep.mubr.bf16.mxu0 0
  %405 = vmatmul.mubr.bf16.gmra.mrb[0].mxu0 %v170
  %v406 = vpop.f32.mrb[0].mxu0
  %v407 = vadd.f32 %v89, %v406
  %v408 = vpop.f32.mrb[0].mxu0
  %v409 = vadd.f32 %v93, %v408
  %v410 = vpop.f32.mrb[0].mxu0
  %v411 = vadd.f32 %v89, %v410
  %v412 = vpop.f32.mrb[0].mxu0
  %v413 = vadd.f32 %v93, %v412
  %414 = vmatprep.mubr.bf16.mxu0 0
  %415 = vmatmul.mubr.bf16.gmra.mrb[0].mxu0 %v171
  %v416 = vpop.f32.mrb[0].mxu0
  %v417 = vadd.f32 %v89, %v416
  %v418 = vpop.f32.mrb[0].mxu0
  %v419 = vadd.f32 %v93, %v418
  %v420 = vpop.f32.mrb[0].mxu0
  %v421 = vadd.f32 %v89, %v420
  %v422 = vpop.f32.mrb[0].mxu0
  %v423 = vadd.f32 %v93, %v422
  %424 = vmatprep.mubr.bf16.mxu0 0
  %425 = vmatmul.mubr.bf16.gmra.mrb[0].mxu0 %v172
  %v426 = vpop.f32.mrb[0].mxu0
  %v427 = vadd.f32 %v89, %v426
  %v428 = vpop.f32.mrb[0].mxu0
  %v429 = vadd.f32 %v93, %v428
  %v430 = vpop.f32.mrb[0].mxu0
  %v431 = vadd.f32 %v89, %v430
  %v432 = vpop.f32.mrb[0].mxu0
  %v433 = vadd.f32 %v93, %v432
  %434 = vmatprep.mubr.bf16.mxu0 0
  %435 = vmatmul.mubr.bf16.gmra.mrb[0].mxu0 %v173
  %v436 = vpop.f32.mrb[0].mxu0
  %v437 = vadd.f32 %v89, %v436
  %v438 = vpop.f32.mrb[0].mxu0
  %v439 = vadd.f32 %v93, %v438
  %v440 = vpop.f32.mrb[0].mxu0
  %v441 = vadd.f32 %v89, %v440
  %v442 = vpop.f32.mrb[0].mxu0
  %v443 = vadd.f32 %v93, %v442
  %444 = vmatprep.mubr.bf16.mxu0 0
  %445 = vmatmul.mubr.bf16.gmra.mrb[0].mxu0 %v174
  %v446 = vpop.f32.mrb[0].mxu0
  %v447 = vadd.f32 %v89, %v446
  %v448 = vpop.f32.mrb[0].mxu0
  %v449 = vadd.f32 %v93, %v448
  %v450 = vpop.f32.mrb[0].mxu0
  %v451 = vadd.f32 %v89, %v450
  %v452 = vpop.f32.mrb[0].mxu0
  %v453 = vadd.f32 %v93, %v452
  %454 = vmatprep.mubr.bf16.mxu0 0
  %455 = vmatmul.mubr.bf16.gmra.mrb[0].mxu0 %v175
  %v456 = vpop.f32.mrb[0].mxu0
  %v457 = vadd.f32 %v89, %v456
  %v458 = vpop.f32.mrb[0].mxu0
  %v459 = vadd.f32 %v93, %v458
  %v460 = vpop.f32.mrb[0].mxu0
  %v461 = vadd.f32 %v89, %v460
  %v462 = vpop.f32.mrb[0].mxu0
  %v463 = vadd.f32 %v93, %v462
  %464 = vdwg.mxu0
  %vm465 = vcmp.gt.f32.partialorder %v307, 0.0
  %vm466 = vcmp.gt.f32.partialorder %v309, 0.0
  %vm467 = vcmp.gt.f32.partialorder %v311, 0.0
  %vm468 = vcmp.gt.f32.partialorder %v313, 0.0
  %vm469 = vcmp.gt.f32.partialorder %v317, 0.0
  %vm470 = vcmp.gt.f32.partialorder %v319, 0.0
  %vm471 = vcmp.gt.f32.partialorder %v321, 0.0
  %vm472 = vcmp.gt.f32.partialorder %v323, 0.0
  %vm473 = vcmp.gt.f32.partialorder %v327, 0.0
  %vm474 = vcmp.gt.f32.partialorder %v329, 0.0
  %vm475 = vcmp.gt.f32.partialorder %v331, 0.0
  %vm476 = vcmp.gt.f32.partialorder %v333, 0.0
  %vm477 = vcmp.gt.f32.partialorder %v337, 0.0
  %vm478 = vcmp.gt.f32.partialorder %v339, 0.0
  %vm479 = vcmp.gt.f32.partialorder %v341, 0.0
  %vm480 = vcmp.gt.f32.partialorder %v343, 0.0
  %vm481 = vcmp.gt.f32.partialorder %v347, 0.0
  %vm482 = vcmp.gt.f32.partialorder %v349, 0.0
  %vm483 = vcmp.gt.f32.partialorder %v351, 0.0
  %vm484 = vcmp.gt.f32.partialorder %v353, 0.0
  %vm485 = vcmp.gt.f32.partialorder %v357, 0.0
  %vm486 = vcmp.gt.f32.partialorder %v359, 0.0
  %vm487 = vcmp.gt.f32.partialorder %v361, 0.0
  %vm488 = vcmp.gt.f32.partialorder %v363, 0.0
  %vm489 = vcmp.gt.f32.partialorder %v367, 0.0
  %vm490 = vcmp.gt.f32.partialorder %v369, 0.0
  %vm491 = vcmp.gt.f32.partialorder %v371, 0.0
  %vm492 = vcmp.gt.f32.partialorder %v373, 0.0
  %vm493 = vcmp.gt.f32.partialorder %v377, 0.0
  %vm494 = vcmp.gt.f32.partialorder %v379, 0.0
  %vm495 = vcmp.gt.f32.partialorder %v381, 0.0
  %vm496 = vcmp.gt.f32.partialorder %v383, 0.0
  %vm497 = vcmp.gt.f32.partialorder %v387, 0.0
  %vm498 = vcmp.gt.f32.partialorder %v389, 0.0
  %vm499 = vcmp.gt.f32.partialorder %v391, 0.0
  %vm500 = vcmp.gt.f32.partialorder %v393, 0.0
  %vm501 = vcmp.gt.f32.partialorder %v397, 0.0
  %vm502 = vcmp.gt.f32.partialorder %v399, 0.0
  %vm503 = vcmp.gt.f32.partialorder %v401, 0.0
  %vm504 = vcmp.gt.f32.partialorder %v403, 0.0
  %vm505 = vcmp.gt.f32.partialorder %v407, 0.0
  %vm506 = vcmp.gt.f32.partialorder %v409, 0.0
  %vm507 = vcmp.gt.f32.partialorder %v411, 0.0
  %vm508 = vcmp.gt.f32.partialorder %v413, 0.0
  %vm509 = vcmp.gt.f32.partialorder %v417, 0.0
  %vm510 = vcmp.gt.f32.partialorder %v419, 0.0
  %vm511 = vcmp.gt.f32.partialorder %v421, 0.0
  %vm512 = vcmp.gt.f32.partialorder %v423, 0.0
  %vm513 = vcmp.gt.f32.partialorder %v427, 0.0
  %vm514 = vcmp.gt.f32.partialorder %v429, 0.0
  %vm515 = vcmp.gt.f32.partialorder %v431, 0.0
  %vm516 = vcmp.gt.f32.partialorder %v433, 0.0
  %vm517 = vcmp.gt.f32.partialorder %v437, 0.0
  %vm518 = vcmp.gt.f32.partialorder %v439, 0.0
  %vm519 = vcmp.gt.f32.partialorder %v441, 0.0
  %vm520 = vcmp.gt.f32.partialorder %v443, 0.0
  %vm521 = vcmp.gt.f32.partialorder %v447, 0.0
  %vm522 = vcmp.gt.f32.partialorder %v449, 0.0
  %vm523 = vcmp.gt.f32.partialorder %v451, 0.0
  %vm524 = vcmp.gt.f32.partialorder %v453, 0.0
  %vm525 = vcmp.gt.f32.partialorder %v457, 0.0
  %vm526 = vcmp.gt.f32.partialorder %v459, 0.0
  %vm527 = vcmp.gt.f32.partialorder %v461, 0.0
  %vm528 = vcmp.gt.f32.partialorder %v463, 0.0
  %v529 = vmul.f32 %v307, 0.01
  %v530 = vmul.f32 %v309, 0.01
  %v531 = vmul.f32 %v311, 0.01
  %v532 = vmul.f32 %v313, 0.01
  %v533 = vmul.f32 %v317, 0.01
  %v534 = vmul.f32 %v319, 0.01
  %v535 = vmul.f32 %v321, 0.01
  %v536 = vmul.f32 %v323, 0.01
  %v537 = vmul.f32 %v327, 0.01
  %v538 = vmul.f32 %v329, 0.01
  %v539 = vmul.f32 %v331, 0.01
  %v540 = vmul.f32 %v333, 0.01
  %v541 = vmul.f32 %v337, 0.01
  %v542 = vmul.f32 %v339, 0.01
  %v543 = vmul.f32 %v341, 0.01
  %v544 = vmul.f32 %v343, 0.01
  %v545 = vmul.f32 %v347, 0.01
  %v546 = vmul.f32 %v349, 0.01
  %v547 = vmul.f32 %v351, 0.01
  %v548 = vmul.f32 %v353, 0.01
  %v549 = vmul.f32 %v357, 0.01
  %v550 = vmul.f32 %v359, 0.01
  %v551 = vmul.f32 %v361, 0.01
  %v552 = vmul.f32 %v363, 0.01
  %v553 = vmul.f32 %v367, 0.01
  %v554 = vmul.f32 %v369, 0.01
  %v555 = vmul.f32 %v371, 0.01
  %v556 = vmul.f32 %v373, 0.01
  %v557 = vmul.f32 %v377, 0.01
  %v558 = vmul.f32 %v379, 0.01
  %v559 = vmul.f32 %v381, 0.01
  %v560 = vmul.f32 %v383, 0.01
  %v561 = vmul.f32 %v387, 0.01
  %v562 = vmul.f32 %v389, 0.01
  %v563 = vmul.f32 %v391, 0.01
  %v564 = vmul.f32 %v393, 0.01
  %v565 = vmul.f32 %v397, 0.01
  %v566 = vmul.f32 %v399, 0.01
  %v567 = vmul.f32 %v401, 0.01
  %v568 = vmul.f32 %v403, 0.01
  %v569 = vmul.f32 %v407, 0.01
  %v570 = vmul.f32 %v409, 0.01
  %v571 = vmul.f32 %v411, 0.01
  %v572 = vmul.f32 %v413, 0.01
  %v573 = vmul.f32 %v417, 0.01
  %v574 = vmul.f32 %v419, 0.01
  %v575 = vmul.f32 %v421, 0.01
  %v576 = vmul.f32 %v423, 0.01
  %v577 = vmul.f32 %v427, 0.01
  %v578 = vmul.f32 %v429, 0.01
  %v579 = vmul.f32 %v431, 0.01
  %v580 = vmul.f32 %v433, 0.01
  %v581 = vmul.f32 %v437, 0.01
  %v582 = vmul.f32 %v439, 0.01
  %v583 = vmul.f32 %v441, 0.01
  %v584 = vmul.f32 %v443, 0.01
  %v585 = vmul.f32 %v447, 0.01
  %v586 = vmul.f32 %v449, 0.01
  %v587 = vmul.f32 %v451, 0.01
  %v588 = vmul.f32 %v453, 0.01
  %v589 = vmul.f32 %v457, 0.01
  %v590 = vmul.f32 %v459, 0.01
  %v591 = vmul.f32 %v461, 0.01
  %v592 = vmul.f32 %v463, 0.01
  %v593 = vsel %vm465, %v307, %v529
  %v594 = vsel %vm466, %v309, %v530
  %v595 = vsel %vm467, %v311, %v531
  %v596 = vsel %vm468, %v313, %v532
  %v597 = vsel %vm469, %v317, %v533
  %v598 = vsel %vm470, %v319, %v534
  %v599 = vsel %vm471, %v321, %v535
  %v600 = vsel %vm472, %v323, %v536
  %v601 = vsel %vm473, %v327, %v537
  %v602 = vsel %vm474, %v329, %v538
  %v603 = vsel %vm475, %v331, %v539
  %v604 = vsel %vm476, %v333, %v540
  %v605 = vsel %vm477, %v337, %v541
  %v606 = vsel %vm478, %v339, %v542
  %v607 = vsel %vm479, %v341, %v543
  %v608 = vsel %vm480, %v343, %v544
  %v609 = vsel %vm481, %v347, %v545
  %v610 = vsel %vm482, %v349, %v546
  %v611 = vsel %vm483, %v351, %v547
  %v612 = vsel %vm484, %v353, %v548
  %v613 = vsel %vm485, %v357, %v549
  %v614 = vsel %vm486, %v359, %v550
  %v615 = vsel %vm487, %v361, %v551
  %v616 = vsel %vm488, %v363, %v552
  %v617 = vsel %vm489, %v367, %v553
  %v618 = vsel %vm490, %v369, %v554
  %v619 = vsel %vm491, %v371, %v555
  %v620 = vsel %vm492, %v373, %v556
  %v621 = vsel %vm493, %v377, %v557
  %v622 = vsel %vm494, %v379, %v558
  %v623 = vsel %vm495, %v381, %v559
  %v624 = vsel %vm496, %v383, %v560
  %v625 = vsel %vm497, %v387, %v561
  %v626 = vsel %vm498, %v389, %v562
  %v627 = vsel %vm499, %v391, %v563
  %v628 = vsel %vm500, %v393, %v564
  %v629 = vsel %vm501, %v397, %v565
  %v630 = vsel %vm502, %v399, %v566
  %v631 = vsel %vm503, %v401, %v567
  %v632 = vsel %vm504, %v403, %v568
  %v633 = vsel %vm505, %v407, %v569
  %v634 = vsel %vm506, %v409, %v570
  %v635 = vsel %vm507, %v411, %v571
  %v636 = vsel %vm508, %v413, %v572
  %v637 = vsel %vm509, %v417, %v573
  %v638 = vsel %vm510, %v419, %v574
  %v639 = vsel %vm511, %v421, %v575
  %v640 = vsel %vm512, %v423, %v576
  %v641 = vsel %vm513, %v427, %v577
  %v642 = vsel %vm514, %v429, %v578
  %v643 = vsel %vm515, %v431, %v579
  %v644 = vsel %vm516, %v433, %v580
  %v645 = vsel %vm517, %v437, %v581
  %v646 = vsel %vm518, %v439, %v582
  %v647 = vsel %vm519, %v441, %v583
  %v648 = vsel %vm520, %v443, %v584
  %v649 = vsel %vm521, %v447, %v585
  %v650 = vsel %vm522, %v449, %v586
  %v651 = vsel %vm523, %v451, %v587
  %v652 = vsel %vm524, %v453, %v588
  %v653 = vsel %vm525, %v457, %v589
  %v654 = vsel %vm526, %v459, %v590
  %v655 = vsel %vm527, %v461, %v591
  %v656 = vsel %vm528, %v463, %v592
  %v657 = vpack.c.bf16 %v595, %v593
  %v658 = vpack.c.bf16 %v596, %v594
  %v659 = vpack.c.bf16 %v599, %v597
  %v660 = vpack.c.bf16 %v600, %v598
  %v661 = vpack.c.bf16 %v603, %v601
  %v662 = vpack.c.bf16 %v604, %v602
  %v663 = vpack.c.bf16 %v607, %v605
  %v664 = vpack.c.bf16 %v608, %v606
  %v665 = vpack.c.bf16 %v611, %v609
  %v666 = vpack.c.bf16 %v612, %v610
  %v667 = vpack.c.bf16 %v615, %v613
  %v668 = vpack.c.bf16 %v616, %v614
  %v669 = vpack.c.bf16 %v619, %v617
  %v670 = vpack.c.bf16 %v620, %v618
  %v671 = vpack.c.bf16 %v623, %v621
  %v672 = vpack.c.bf16 %v624, %v622
  %v673 = vpack.c.bf16 %v627, %v625
  %v674 = vpack.c.bf16 %v628, %v626
  %v675 = vpack.c.bf16 %v631, %v629
  %v676 = vpack.c.bf16 %v632, %v630
  %v677 = vpack.c.bf16 %v635, %v633
  %v678 = vpack.c.bf16 %v636, %v634
  %v679 = vpack.c.bf16 %v639, %v637
  %v680 = vpack.c.bf16 %v640, %v638
  %v681 = vpack.c.bf16 %v643, %v641
  %v682 = vpack.c.bf16 %v644, %v642
  %v683 = vpack.c.bf16 %v647, %v645
  %v684 = vpack.c.bf16 %v648, %v646
  %v685 = vpack.c.bf16 %v651, %v649
  %v686 = vpack.c.bf16 %v652, %v650
  %v687 = vpack.c.bf16 %v655, %v653
  %v688 = vpack.c.bf16 %v656, %v654
  %v689 = vld [vmem:[%s4] sm:$0xf]
  %v690 = vld [vmem:[%s4 + $0x4] sm:$0xf]
  %v691 = vld [vmem:[%s4 + $0x8] sm:$0xf]
  %v692 = vld [vmem:[%s4 + $0xc] sm:$0xf]
  %v693 = vld [vmem:[%s4 + $0x10] sm:$0xf]
  %v694 = vld [vmem:[%s4 + $0x14] sm:$0xf]
  %v695 = vld [vmem:[%s4 + $0x18] sm:$0xf]
  %v696 = vld [vmem:[%s4 + $0x1c] sm:$0xf]
  %v697 = vld [vmem:[%s4 + $0x20] sm:$0xf]
  %v698 = vld [vmem:[%s4 + $0x24] sm:$0xf]
  %v699 = vld [vmem:[%s4 + $0x28] sm:$0xf]
  %v700 = vld [vmem:[%s4 + $0x2c] sm:$0xf]
  %v701 = vld [vmem:[%s4 + $0x30] sm:$0xf]
  %v702 = vld [vmem:[%s4 + $0x34] sm:$0xf]
  %v703 = vld [vmem:[%s4 + $0x38] sm:$0xf]
  %v704 = vld [vmem:[%s4 + $0x3c] sm:$0xf]
  %v705 = vld [vmem:[%s5] sm:$0x1]
  %v707 = vlaneseq
  %v708 = vshrl.u32 %v707, 7
  %v709 = vsub.s32 0, %v708
  %v710 = vrot.slane %v705, %v709
  %v728 = vunpack.c.l.b16 %v689
  %v729 = vunpack.c.l.b16 %v690
  %v730 = vunpack.c.l.b16 %v691
  %v731 = vunpack.c.l.b16 %v692
  %v732 = vunpack.c.l.b16 %v693
  %v733 = vunpack.c.l.b16 %v694
  %v734 = vunpack.c.l.b16 %v695
  %v735 = vunpack.c.l.b16 %v696
  %v736 = vunpack.c.l.b16 %v697
  %v737 = vunpack.c.l.b16 %v698
  %v738 = vunpack.c.l.b16 %v699
  %v739 = vunpack.c.l.b16 %v700
  %v740 = vunpack.c.l.b16 %v701
  %v741 = vunpack.c.l.b16 %v702
  %v742 = vunpack.c.l.b16 %v703
  %v743 = vunpack.c.l.b16 %v704
  %v744 = vpack.c.b16 %v729, %v728
  %v745 = vpack.c.b16 %v731, %v730
  %v746 = vpack.c.b16 %v733, %v732
  %v747 = vpack.c.b16 %v735, %v734
  %v748 = vpack.c.b16 %v737, %v736
  %v749 = vpack.c.b16 %v739, %v738
  %v750 = vpack.c.b16 %v741, %v740
  %v751 = vpack.c.b16 %v743, %v742
  %760 = vmatprep.subr.bf16.mxu0 0
  %761 = vmatpush1.bf16.msra.mxu0 %v744
  %762 = vmatprep.subr.bf16.mxu0 0
  %763 = vmatpush1.bf16.msra.mxu0 %v745
  %764 = vmatprep.subr.bf16.mxu0 0
  %765 = vmatpush1.bf16.msra.mxu0 %v746
  %766 = vmatprep.subr.bf16.mxu0 0
  %767 = vmatpush1.bf16.msra.mxu0 %v747
  %768 = vmatprep.subr.bf16.mxu0 0
  %769 = vmatpush1.bf16.msra.mxu0 %v748
  %770 = vmatprep.subr.bf16.mxu0 0
  %771 = vmatpush1.bf16.msra.mxu0 %v749
  %772 = vmatprep.subr.bf16.mxu0 0
  %773 = vmatpush1.bf16.msra.mxu0 %v750
  %774 = vmatprep.subr.bf16.mxu0 0
  %775 = vmatpush1.bf16.msra.mxu0 %v751
  %776 = vmatprep.subr.bf16.mxu0 0
  %777 = vmatpush1.bf16.msra.mxu0 0
  %778 = vmatprep.subr.bf16.mxu0 0
  %779 = vmatpush1.bf16.msra.mxu0 0
  %780 = vmatprep.subr.bf16.mxu0 0
  %781 = vmatpush1.bf16.msra.mxu0 0
  %782 = vmatprep.subr.bf16.mxu0 0
  %783 = vmatpush1.bf16.msra.mxu0 0
  %784 = vmatprep.subr.bf16.mxu0 0
  %785 = vmatpush1.bf16.msra.mxu0 0
  %786 = vmatprep.subr.bf16.mxu0 0
  %787 = vmatpush1.bf16.msra.mxu0 0
  %788 = vmatprep.subr.bf16.mxu0 0
  %789 = vmatpush1.bf16.msra.mxu0 0
  %790 = vmatprep.subr.bf16.mxu0 0
  %791 = vmatpush1.bf16.msra.mxu0 0
  %792 = vmatprep.mubr.bf16.mxu0 0
  %793 = vmatmul.mubr.bf16.gmra.mrb[0].mxu0 %v657
  %v794 = vpop.f32.mrb[0].mxu0
  %v795 = vadd.f32 %v710, %v794
  %v796 = vpop.f32.mrb[0].mxu0
  %v797 = vpop.f32.mrb[0].mxu0
  %v798 = vadd.f32 %v710, %v797
  %v799 = vpop.f32.mrb[0].mxu0
  %800 = vmatprep.mubr.bf16.mxu0 0
  %801 = vmatmul.mubr.bf16.gmra.mrb[0].mxu0 %v659
  %v802 = vpop.f32.mrb[0].mxu0
  %v803 = vadd.f32 %v710, %v802
  %v804 = vpop.f32.mrb[0].mxu0
  %v805 = vpop.f32.mrb[0].mxu0
  %v806 = vadd.f32 %v710, %v805
  %v807 = vpop.f32.mrb[0].mxu0
  %808 = vmatprep.mubr.bf16.mxu0 0
  %809 = vmatmul.mubr.bf16.gmra.mrb[0].mxu0 %v661
  %v810 = vpop.f32.mrb[0].mxu0
  %v811 = vadd.f32 %v710, %v810
  %v812 = vpop.f32.mrb[0].mxu0
  %v813 = vpop.f32.mrb[0].mxu0
  %v814 = vadd.f32 %v710, %v813
  %v815 = vpop.f32.mrb[0].mxu0
  %816 = vmatprep.mubr.bf16.mxu0 0
  %817 = vmatmul.mubr.bf16.gmra.mrb[0].mxu0 %v663
  %v818 = vpop.f32.mrb[0].mxu0
  %v819 = vadd.f32 %v710, %v818
  %v820 = vpop.f32.mrb[0].mxu0
  %v821 = vpop.f32.mrb[0].mxu0
  %v822 = vadd.f32 %v710, %v821
  %v823 = vpop.f32.mrb[0].mxu0
  %824 = vmatprep.mubr.bf16.mxu0 0
  %825 = vmatmul.mubr.bf16.gmra.mrb[0].mxu0 %v665
  %v826 = vpop.f32.mrb[0].mxu0
  %v827 = vadd.f32 %v710, %v826
  %v828 = vpop.f32.mrb[0].mxu0
  %v829 = vpop.f32.mrb[0].mxu0
  %v830 = vadd.f32 %v710, %v829
  %v831 = vpop.f32.mrb[0].mxu0
  %832 = vmatprep.mubr.bf16.mxu0 0
  %833 = vmatmul.mubr.bf16.gmra.mrb[0].mxu0 %v667
  %v834 = vpop.f32.mrb[0].mxu0
  %v835 = vadd.f32 %v710, %v834
  %v836 = vpop.f32.mrb[0].mxu0
  %v837 = vpop.f32.mrb[0].mxu0
  %v838 = vadd.f32 %v710, %v837
  %v839 = vpop.f32.mrb[0].mxu0
  %840 = vmatprep.mubr.bf16.mxu0 0
  %841 = vmatmul.mubr.bf16.gmra.mrb[0].mxu0 %v669
  %v842 = vpop.f32.mrb[0].mxu0
  %v843 = vadd.f32 %v710, %v842
  %v844 = vpop.f32.mrb[0].mxu0
  %v845 = vpop.f32.mrb[0].mxu0
  %v846 = vadd.f32 %v710, %v845
  %v847 = vpop.f32.mrb[0].mxu0
  %848 = vmatprep.mubr.bf16.mxu0 0
  %849 = vmatmul.mubr.bf16.gmra.mrb[0].mxu0 %v671
  %v850 = vpop.f32.mrb[0].mxu0
  %v851 = vadd.f32 %v710, %v850
  %v852 = vpop.f32.mrb[0].mxu0
  %v853 = vpop.f32.mrb[0].mxu0
  %v854 = vadd.f32 %v710, %v853
  %v855 = vpop.f32.mrb[0].mxu0
  %856 = vmatprep.mubr.bf16.mxu0 0
  %857 = vmatmul.mubr.bf16.gmra.mrb[0].mxu0 %v673
  %v858 = vpop.f32.mrb[0].mxu0
  %v859 = vadd.f32 %v710, %v858
  %v860 = vpop.f32.mrb[0].mxu0
  %v861 = vpop.f32.mrb[0].mxu0
  %v862 = vadd.f32 %v710, %v861
  %v863 = vpop.f32.mrb[0].mxu0
  %864 = vmatprep.mubr.bf16.mxu0 0
  %865 = vmatmul.mubr.bf16.gmra.mrb[0].mxu0 %v675
  %v866 = vpop.f32.mrb[0].mxu0
  %v867 = vadd.f32 %v710, %v866
  %v868 = vpop.f32.mrb[0].mxu0
  %v869 = vpop.f32.mrb[0].mxu0
  %v870 = vadd.f32 %v710, %v869
  %v871 = vpop.f32.mrb[0].mxu0
  %872 = vmatprep.mubr.bf16.mxu0 0
  %873 = vmatmul.mubr.bf16.gmra.mrb[0].mxu0 %v677
  %v874 = vpop.f32.mrb[0].mxu0
  %v875 = vadd.f32 %v710, %v874
  %v876 = vpop.f32.mrb[0].mxu0
  %v877 = vpop.f32.mrb[0].mxu0
  %v878 = vadd.f32 %v710, %v877
  %v879 = vpop.f32.mrb[0].mxu0
  %880 = vmatprep.mubr.bf16.mxu0 0
  %881 = vmatmul.mubr.bf16.gmra.mrb[0].mxu0 %v679
  %v882 = vpop.f32.mrb[0].mxu0
  %v883 = vadd.f32 %v710, %v882
  %v884 = vpop.f32.mrb[0].mxu0
  %v885 = vpop.f32.mrb[0].mxu0
  %v886 = vadd.f32 %v710, %v885
  %v887 = vpop.f32.mrb[0].mxu0
  %888 = vmatprep.mubr.bf16.mxu0 0
  %889 = vmatmul.mubr.bf16.gmra.mrb[0].mxu0 %v681
  %v890 = vpop.f32.mrb[0].mxu0
  %v891 = vadd.f32 %v710, %v890
  %v892 = vpop.f32.mrb[0].mxu0
  %v893 = vpop.f32.mrb[0].mxu0
  %v894 = vadd.f32 %v710, %v893
  %v895 = vpop.f32.mrb[0].mxu0
  %896 = vmatprep.mubr.bf16.mxu0 0
  %897 = vmatmul.mubr.bf16.gmra.mrb[0].mxu0 %v683
  %v898 = vpop.f32.mrb[0].mxu0
  %v899 = vadd.f32 %v710, %v898
  %v900 = vpop.f32.mrb[0].mxu0
  %v901 = vpop.f32.mrb[0].mxu0
  %v902 = vadd.f32 %v710, %v901
  %v903 = vpop.f32.mrb[0].mxu0
  %904 = vmatprep.mubr.bf16.mxu0 0
  %905 = vmatmul.mubr.bf16.gmra.mrb[0].mxu0 %v685
  %v906 = vpop.f32.mrb[0].mxu0
  %v907 = vadd.f32 %v710, %v906
  %v908 = vpop.f32.mrb[0].mxu0
  %v909 = vpop.f32.mrb[0].mxu0
  %v910 = vadd.f32 %v710, %v909
  %v911 = vpop.f32.mrb[0].mxu0
  %912 = vmatprep.mubr.bf16.mxu0 0
  %913 = vmatmul.mubr.bf16.gmra.mrb[0].mxu0 %v687
  %v914 = vpop.f32.mrb[0].mxu0
  %v915 = vadd.f32 %v710, %v914
  %v916 = vpop.f32.mrb[0].mxu0
  %v917 = vpop.f32.mrb[0].mxu0
  %v918 = vadd.f32 %v710, %v917
  %v919 = vpop.f32.mrb[0].mxu0
  %920 = vdwg.mxu0
  %vm921 = vcmp.gt.f32.partialorder %v795, 0.0
  %vm922 = vcmp.gt.f32.partialorder %v798, 0.0
  %vm923 = vcmp.gt.f32.partialorder %v803, 0.0
  %vm924 = vcmp.gt.f32.partialorder %v806, 0.0
  %vm925 = vcmp.gt.f32.partialorder %v811, 0.0
  %vm926 = vcmp.gt.f32.partialorder %v814, 0.0
  %vm927 = vcmp.gt.f32.partialorder %v819, 0.0
  %vm928 = vcmp.gt.f32.partialorder %v822, 0.0
  %vm929 = vcmp.gt.f32.partialorder %v827, 0.0
  %vm930 = vcmp.gt.f32.partialorder %v830, 0.0
  %vm931 = vcmp.gt.f32.partialorder %v835, 0.0
  %vm932 = vcmp.gt.f32.partialorder %v838, 0.0
  %vm933 = vcmp.gt.f32.partialorder %v843, 0.0
  %vm934 = vcmp.gt.f32.partialorder %v846, 0.0
  %vm935 = vcmp.gt.f32.partialorder %v851, 0.0
  %vm936 = vcmp.gt.f32.partialorder %v854, 0.0
  %vm937 = vcmp.gt.f32.partialorder %v859, 0.0
  %vm938 = vcmp.gt.f32.partialorder %v862, 0.0
  %vm939 = vcmp.gt.f32.partialorder %v867, 0.0
  %vm940 = vcmp.gt.f32.partialorder %v870, 0.0
  %vm941 = vcmp.gt.f32.partialorder %v875, 0.0
  %vm942 = vcmp.gt.f32.partialorder %v878, 0.0
  %vm943 = vcmp.gt.f32.partialorder %v883, 0.0
  %vm944 = vcmp.gt.f32.partialorder %v886, 0.0
  %vm945 = vcmp.gt.f32.partialorder %v891, 0.0
  %vm946 = vcmp.gt.f32.partialorder %v894, 0.0
  %vm947 = vcmp.gt.f32.partialorder %v899, 0.0
  %vm948 = vcmp.gt.f32.partialorder %v902, 0.0
  %vm949 = vcmp.gt.f32.partialorder %v907, 0.0
  %vm950 = vcmp.gt.f32.partialorder %v910, 0.0
  %vm951 = vcmp.gt.f32.partialorder %v915, 0.0
  %vm952 = vcmp.gt.f32.partialorder %v918, 0.0
  %v953 = vmul.f32 %v795, 0.01
  %v954 = vmul.f32 %v798, 0.01
  %v955 = vmul.f32 %v803, 0.01
  %v956 = vmul.f32 %v806, 0.01
  %v957 = vmul.f32 %v811, 0.01
  %v958 = vmul.f32 %v814, 0.01
  %v959 = vmul.f32 %v819, 0.01
  %v960 = vmul.f32 %v822, 0.01
  %v961 = vmul.f32 %v827, 0.01
  %v962 = vmul.f32 %v830, 0.01
  %v963 = vmul.f32 %v835, 0.01
  %v964 = vmul.f32 %v838, 0.01
  %v965 = vmul.f32 %v843, 0.01
  %v966 = vmul.f32 %v846, 0.01
  %v967 = vmul.f32 %v851, 0.01
  %v968 = vmul.f32 %v854, 0.01
  %v969 = vmul.f32 %v859, 0.01
  %v970 = vmul.f32 %v862, 0.01
  %v971 = vmul.f32 %v867, 0.01
  %v972 = vmul.f32 %v870, 0.01
  %v973 = vmul.f32 %v875, 0.01
  %v974 = vmul.f32 %v878, 0.01
  %v975 = vmul.f32 %v883, 0.01
  %v976 = vmul.f32 %v886, 0.01
  %v977 = vmul.f32 %v891, 0.01
  %v978 = vmul.f32 %v894, 0.01
  %v979 = vmul.f32 %v899, 0.01
  %v980 = vmul.f32 %v902, 0.01
  %v981 = vmul.f32 %v907, 0.01
  %v982 = vmul.f32 %v910, 0.01
  %v983 = vmul.f32 %v915, 0.01
  %v984 = vmul.f32 %v918, 0.01
  %v985 = vsel %vm921, %v795, %v953
  %v986 = vsel %vm922, %v798, %v954
  %v987 = vsel %vm923, %v803, %v955
  %v988 = vsel %vm924, %v806, %v956
  %v989 = vsel %vm925, %v811, %v957
  %v990 = vsel %vm926, %v814, %v958
  %v991 = vsel %vm927, %v819, %v959
  %v992 = vsel %vm928, %v822, %v960
  %v993 = vsel %vm929, %v827, %v961
  %v994 = vsel %vm930, %v830, %v962
  %v995 = vsel %vm931, %v835, %v963
  %v996 = vsel %vm932, %v838, %v964
  %v997 = vsel %vm933, %v843, %v965
  %v998 = vsel %vm934, %v846, %v966
  %v999 = vsel %vm935, %v851, %v967
  %v1000 = vsel %vm936, %v854, %v968
  %v1001 = vsel %vm937, %v859, %v969
  %v1002 = vsel %vm938, %v862, %v970
  %v1003 = vsel %vm939, %v867, %v971
  %v1004 = vsel %vm940, %v870, %v972
  %v1005 = vsel %vm941, %v875, %v973
  %v1006 = vsel %vm942, %v878, %v974
  %v1007 = vsel %vm943, %v883, %v975
  %v1008 = vsel %vm944, %v886, %v976
  %v1009 = vsel %vm945, %v891, %v977
  %v1010 = vsel %vm946, %v894, %v978
  %v1011 = vsel %vm947, %v899, %v979
  %v1012 = vsel %vm948, %v902, %v980
  %v1013 = vsel %vm949, %v907, %v981
  %v1014 = vsel %vm950, %v910, %v982
  %v1015 = vsel %vm951, %v915, %v983
  %v1016 = vsel %vm952, %v918, %v984
  %v1017 = vld [vmem:[%s6] sm:$0xf]
  %v1018 = vld [vmem:[%s6 + $0x4] sm:$0xf]
  %v1019 = vld [vmem:[%s6 + $0x8] sm:$0xf]
  %v1020 = vld [vmem:[%s6 + $0xc] sm:$0xf]
  %v1021 = vld [vmem:[%s6 + $0x10] sm:$0xf]
  %v1022 = vld [vmem:[%s6 + $0x14] sm:$0xf]
  %v1023 = vld [vmem:[%s6 + $0x18] sm:$0xf]
  %v1024 = vld [vmem:[%s6 + $0x1c] sm:$0xf]
  %v1025 = vld [vmem:[%s6 + $0x20] sm:$0xf]
  %v1026 = vld [vmem:[%s6 + $0x24] sm:$0xf]
  %v1027 = vld [vmem:[%s6 + $0x28] sm:$0xf]
  %v1028 = vld [vmem:[%s6 + $0x2c] sm:$0xf]
  %v1029 = vld [vmem:[%s6 + $0x30] sm:$0xf]
  %v1030 = vld [vmem:[%s6 + $0x34] sm:$0xf]
  %v1031 = vld [vmem:[%s6 + $0x38] sm:$0xf]
  %v1032 = vld [vmem:[%s6 + $0x3c] sm:$0xf]
  %v1033 = vld [vmem:[%s7] sm:$0x1]
  %v1035 = vlaneseq
  %v1036 = vshrl.u32 %v1035, 7
  %v1037 = vsub.s32 0, %v1036
  %v1038 = vrot.slane %v1033, %v1037
  %v1056 = vunpack.c.l.b16 %v1017
  %v1057 = vunpack.c.l.b16 %v1018
  %v1058 = vunpack.c.l.b16 %v1019
  %v1059 = vunpack.c.l.b16 %v1020
  %v1060 = vunpack.c.l.b16 %v1021
  %v1061 = vunpack.c.l.b16 %v1022
  %v1062 = vunpack.c.l.b16 %v1023
  %v1063 = vunpack.c.l.b16 %v1024
  %v1064 = vunpack.c.l.b16 %v1025
  %v1065 = vunpack.c.l.b16 %v1026
  %v1066 = vunpack.c.l.b16 %v1027
  %v1067 = vunpack.c.l.b16 %v1028
  %v1068 = vunpack.c.l.b16 %v1029
  %v1069 = vunpack.c.l.b16 %v1030
  %v1070 = vunpack.c.l.b16 %v1031
  %v1071 = vunpack.c.l.b16 %v1032
  %v1072 = vpack.c.b16 %v1057, %v1056
  %v1073 = vpack.c.b16 %v1059, %v1058
  %v1074 = vpack.c.b16 %v1061, %v1060
  %v1075 = vpack.c.b16 %v1063, %v1062
  %v1076 = vpack.c.b16 %v1065, %v1064
  %v1077 = vpack.c.b16 %v1067, %v1066
  %v1078 = vpack.c.b16 %v1069, %v1068
  %v1079 = vpack.c.b16 %v1071, %v1070
  %1088 = vmatprep.subr.bf16.mxu0 0
  %1089 = vmatpush1.bf16.msra.mxu0 %v1072
  %1090 = vmatprep.subr.bf16.mxu0 0
  %1091 = vmatpush1.bf16.msra.mxu0 %v1073
  %1092 = vmatprep.subr.bf16.mxu0 0
  %1093 = vmatpush1.bf16.msra.mxu0 %v1074
  %1094 = vmatprep.subr.bf16.mxu0 0
  %1095 = vmatpush1.bf16.msra.mxu0 %v1075
  %1096 = vmatprep.subr.bf16.mxu0 0
  %1097 = vmatpush1.bf16.msra.mxu0 %v1076
  %1098 = vmatprep.subr.bf16.mxu0 0
  %1099 = vmatpush1.bf16.msra.mxu0 %v1077
  %1100 = vmatprep.subr.bf16.mxu0 0
  %1101 = vmatpush1.bf16.msra.mxu0 %v1078
  %1102 = vmatprep.subr.bf16.mxu0 0
  %1103 = vmatpush1.bf16.msra.mxu0 %v1079
  %1104 = vmatprep.subr.bf16.mxu0 0
  %1105 = vmatpush1.bf16.msra.mxu0 0
  %1106 = vmatprep.subr.bf16.mxu0 0
  %1107 = vmatpush1.bf16.msra.mxu0 0
  %1108 = vmatprep.subr.bf16.mxu0 0
  %1109 = vmatpush1.bf16.msra.mxu0 0
  %1110 = vmatprep.subr.bf16.mxu0 0
  %1111 = vmatpush1.bf16.msra.mxu0 0
  %1112 = vmatprep.subr.bf16.mxu0 0
  %1113 = vmatpush1.bf16.msra.mxu0 0
  %1114 = vmatprep.subr.bf16.mxu0 0
  %1115 = vmatpush1.bf16.msra.mxu0 0
  %1116 = vmatprep.subr.bf16.mxu0 0
  %1117 = vmatpush1.bf16.msra.mxu0 0
  %1118 = vmatprep.subr.bf16.mxu0 0
  %1119 = vmatpush1.bf16.msra.mxu0 0
  %1120 = vmatprep.mubr.bf16.mxu0 0
  %1121 = vmatmul.mubr.bf16.gmra.mrb[0].mxu0 %v658
  %v1122 = vpop.f32.mrb[0].mxu0
  %v1123 = vadd.f32 %v1038, %v1122
  %v1124 = vpop.f32.mrb[0].mxu0
  %v1125 = vpop.f32.mrb[0].mxu0
  %v1126 = vadd.f32 %v1038, %v1125
  %v1127 = vpop.f32.mrb[0].mxu0
  %1128 = vmatprep.mubr.bf16.mxu0 0
  %1129 = vmatmul.mubr.bf16.gmra.mrb[0].mxu0 %v660
  %v1130 = vpop.f32.mrb[0].mxu0
  %v1131 = vadd.f32 %v1038, %v1130
  %v1132 = vpop.f32.mrb[0].mxu0
  %v1133 = vpop.f32.mrb[0].mxu0
  %v1134 = vadd.f32 %v1038, %v1133
  %v1135 = vpop.f32.mrb[0].mxu0
  %1136 = vmatprep.mubr.bf16.mxu0 0
  %1137 = vmatmul.mubr.bf16.gmra.mrb[0].mxu0 %v662
  %v1138 = vpop.f32.mrb[0].mxu0
  %v1139 = vadd.f32 %v1038, %v1138
  %v1140 = vpop.f32.mrb[0].mxu0
  %v1141 = vpop.f32.mrb[0].mxu0
  %v1142 = vadd.f32 %v1038, %v1141
  %v1143 = vpop.f32.mrb[0].mxu0
  %1144 = vmatprep.mubr.bf16.mxu0 0
  %1145 = vmatmul.mubr.bf16.gmra.mrb[0].mxu0 %v664
  %v1146 = vpop.f32.mrb[0].mxu0
  %v1147 = vadd.f32 %v1038, %v1146
  %v1148 = vpop.f32.mrb[0].mxu0
  %v1149 = vpop.f32.mrb[0].mxu0
  %v1150 = vadd.f32 %v1038, %v1149
  %v1151 = vpop.f32.mrb[0].mxu0
  %1152 = vmatprep.mubr.bf16.mxu0 0
  %1153 = vmatmul.mubr.bf16.gmra.mrb[0].mxu0 %v666
  %v1154 = vpop.f32.mrb[0].mxu0
  %v1155 = vadd.f32 %v1038, %v1154
  %v1156 = vpop.f32.mrb[0].mxu0
  %v1157 = vpop.f32.mrb[0].mxu0
  %v1158 = vadd.f32 %v1038, %v1157
  %v1159 = vpop.f32.mrb[0].mxu0
  %1160 = vmatprep.mubr.bf16.mxu0 0
  %1161 = vmatmul.mubr.bf16.gmra.mrb[0].mxu0 %v668
  %v1162 = vpop.f32.mrb[0].mxu0
  %v1163 = vadd.f32 %v1038, %v1162
  %v1164 = vpop.f32.mrb[0].mxu0
  %v1165 = vpop.f32.mrb[0].mxu0
  %v1166 = vadd.f32 %v1038, %v1165
  %v1167 = vpop.f32.mrb[0].mxu0
  %1168 = vmatprep.mubr.bf16.mxu0 0
  %1169 = vmatmul.mubr.bf16.gmra.mrb[0].mxu0 %v670
  %v1170 = vpop.f32.mrb[0].mxu0
  %v1171 = vadd.f32 %v1038, %v1170
  %v1172 = vpop.f32.mrb[0].mxu0
  %v1173 = vpop.f32.mrb[0].mxu0
  %v1174 = vadd.f32 %v1038, %v1173
  %v1175 = vpop.f32.mrb[0].mxu0
  %1176 = vmatprep.mubr.bf16.mxu0 0
  %1177 = vmatmul.mubr.bf16.gmra.mrb[0].mxu0 %v672
  %v1178 = vpop.f32.mrb[0].mxu0
  %v1179 = vadd.f32 %v1038, %v1178
  %v1180 = vpop.f32.mrb[0].mxu0
  %v1181 = vpop.f32.mrb[0].mxu0
  %v1182 = vadd.f32 %v1038, %v1181
  %v1183 = vpop.f32.mrb[0].mxu0
  %1184 = vmatprep.mubr.bf16.mxu0 0
  %1185 = vmatmul.mubr.bf16.gmra.mrb[0].mxu0 %v674
  %v1186 = vpop.f32.mrb[0].mxu0
  %v1187 = vadd.f32 %v1038, %v1186
  %v1188 = vpop.f32.mrb[0].mxu0
  %v1189 = vpop.f32.mrb[0].mxu0
  %v1190 = vadd.f32 %v1038, %v1189
  %v1191 = vpop.f32.mrb[0].mxu0
  %1192 = vmatprep.mubr.bf16.mxu0 0
  %1193 = vmatmul.mubr.bf16.gmra.mrb[0].mxu0 %v676
  %v1194 = vpop.f32.mrb[0].mxu0
  %v1195 = vadd.f32 %v1038, %v1194
  %v1196 = vpop.f32.mrb[0].mxu0
  %v1197 = vpop.f32.mrb[0].mxu0
  %v1198 = vadd.f32 %v1038, %v1197
  %v1199 = vpop.f32.mrb[0].mxu0
  %1200 = vmatprep.mubr.bf16.mxu0 0
  %1201 = vmatmul.mubr.bf16.gmra.mrb[0].mxu0 %v678
  %v1202 = vpop.f32.mrb[0].mxu0
  %v1203 = vadd.f32 %v1038, %v1202
  %v1204 = vpop.f32.mrb[0].mxu0
  %v1205 = vpop.f32.mrb[0].mxu0
  %v1206 = vadd.f32 %v1038, %v1205
  %v1207 = vpop.f32.mrb[0].mxu0
  %1208 = vmatprep.mubr.bf16.mxu0 0
  %1209 = vmatmul.mubr.bf16.gmra.mrb[0].mxu0 %v680
  %v1210 = vpop.f32.mrb[0].mxu0
  %v1211 = vadd.f32 %v1038, %v1210
  %v1212 = vpop.f32.mrb[0].mxu0
  %v1213 = vpop.f32.mrb[0].mxu0
  %v1214 = vadd.f32 %v1038, %v1213
  %v1215 = vpop.f32.mrb[0].mxu0
  %1216 = vmatprep.mubr.bf16.mxu0 0
  %1217 = vmatmul.mubr.bf16.gmra.mrb[0].mxu0 %v682
  %v1218 = vpop.f32.mrb[0].mxu0
  %v1219 = vadd.f32 %v1038, %v1218
  %v1220 = vpop.f32.mrb[0].mxu0
  %v1221 = vpop.f32.mrb[0].mxu0
  %v1222 = vadd.f32 %v1038, %v1221
  %v1223 = vpop.f32.mrb[0].mxu0
  %1224 = vmatprep.mubr.bf16.mxu0 0
  %1225 = vmatmul.mubr.bf16.gmra.mrb[0].mxu0 %v684
  %v1226 = vpop.f32.mrb[0].mxu0
  %v1227 = vadd.f32 %v1038, %v1226
  %v1228 = vpop.f32.mrb[0].mxu0
  %v1229 = vpop.f32.mrb[0].mxu0
  %v1230 = vadd.f32 %v1038, %v1229
  %v1231 = vpop.f32.mrb[0].mxu0
  %1232 = vmatprep.mubr.bf16.mxu0 0
  %1233 = vmatmul.mubr.bf16.gmra.mrb[0].mxu0 %v686
  %v1234 = vpop.f32.mrb[0].mxu0
  %v1235 = vadd.f32 %v1038, %v1234
  %v1236 = vpop.f32.mrb[0].mxu0
  %v1237 = vpop.f32.mrb[0].mxu0
  %v1238 = vadd.f32 %v1038, %v1237
  %v1239 = vpop.f32.mrb[0].mxu0
  %1240 = vmatprep.mubr.bf16.mxu0 0
  %1241 = vmatmul.mubr.bf16.gmra.mrb[0].mxu0 %v688
  %v1242 = vpop.f32.mrb[0].mxu0
  %v1243 = vadd.f32 %v1038, %v1242
  %v1244 = vpop.f32.mrb[0].mxu0
  %v1245 = vpop.f32.mrb[0].mxu0
  %v1246 = vadd.f32 %v1038, %v1245
  %v1247 = vpop.f32.mrb[0].mxu0
  %1248 = vdwg.mxu0
  %vm1249 = vcmp.gt.f32.partialorder %v1123, 0.0
  %vm1250 = vcmp.gt.f32.partialorder %v1126, 0.0
  %vm1251 = vcmp.gt.f32.partialorder %v1131, 0.0
  %vm1252 = vcmp.gt.f32.partialorder %v1134, 0.0
  %vm1253 = vcmp.gt.f32.partialorder %v1139, 0.0
  %vm1254 = vcmp.gt.f32.partialorder %v1142, 0.0
  %vm1255 = vcmp.gt.f32.partialorder %v1147, 0.0
  %vm1256 = vcmp.gt.f32.partialorder %v1150, 0.0
  %vm1257 = vcmp.gt.f32.partialorder %v1155, 0.0
  %vm1258 = vcmp.gt.f32.partialorder %v1158, 0.0
  %vm1259 = vcmp.gt.f32.partialorder %v1163, 0.0
  %vm1260 = vcmp.gt.f32.partialorder %v1166, 0.0
  %vm1261 = vcmp.gt.f32.partialorder %v1171, 0.0
  %vm1262 = vcmp.gt.f32.partialorder %v1174, 0.0
  %vm1263 = vcmp.gt.f32.partialorder %v1179, 0.0
  %vm1264 = vcmp.gt.f32.partialorder %v1182, 0.0
  %vm1265 = vcmp.gt.f32.partialorder %v1187, 0.0
  %vm1266 = vcmp.gt.f32.partialorder %v1190, 0.0
  %vm1267 = vcmp.gt.f32.partialorder %v1195, 0.0
  %vm1268 = vcmp.gt.f32.partialorder %v1198, 0.0
  %vm1269 = vcmp.gt.f32.partialorder %v1203, 0.0
  %vm1270 = vcmp.gt.f32.partialorder %v1206, 0.0
  %vm1271 = vcmp.gt.f32.partialorder %v1211, 0.0
  %vm1272 = vcmp.gt.f32.partialorder %v1214, 0.0
  %vm1273 = vcmp.gt.f32.partialorder %v1219, 0.0
  %vm1274 = vcmp.gt.f32.partialorder %v1222, 0.0
  %vm1275 = vcmp.gt.f32.partialorder %v1227, 0.0
  %vm1276 = vcmp.gt.f32.partialorder %v1230, 0.0
  %vm1277 = vcmp.gt.f32.partialorder %v1235, 0.0
  %vm1278 = vcmp.gt.f32.partialorder %v1238, 0.0
  %vm1279 = vcmp.gt.f32.partialorder %v1243, 0.0
  %vm1280 = vcmp.gt.f32.partialorder %v1246, 0.0
  %v1281 = vmul.f32 %v1123, 0.01
  %v1282 = vmul.f32 %v1126, 0.01
  %v1283 = vmul.f32 %v1131, 0.01
  %v1284 = vmul.f32 %v1134, 0.01
  %v1285 = vmul.f32 %v1139, 0.01
  %v1286 = vmul.f32 %v1142, 0.01
  %v1287 = vmul.f32 %v1147, 0.01
  %v1288 = vmul.f32 %v1150, 0.01
  %v1289 = vmul.f32 %v1155, 0.01
  %v1290 = vmul.f32 %v1158, 0.01
  %v1291 = vmul.f32 %v1163, 0.01
  %v1292 = vmul.f32 %v1166, 0.01
  %v1293 = vmul.f32 %v1171, 0.01
  %v1294 = vmul.f32 %v1174, 0.01
  %v1295 = vmul.f32 %v1179, 0.01
  %v1296 = vmul.f32 %v1182, 0.01
  %v1297 = vmul.f32 %v1187, 0.01
  %v1298 = vmul.f32 %v1190, 0.01
  %v1299 = vmul.f32 %v1195, 0.01
  %v1300 = vmul.f32 %v1198, 0.01
  %v1301 = vmul.f32 %v1203, 0.01
  %v1302 = vmul.f32 %v1206, 0.01
  %v1303 = vmul.f32 %v1211, 0.01
  %v1304 = vmul.f32 %v1214, 0.01
  %v1305 = vmul.f32 %v1219, 0.01
  %v1306 = vmul.f32 %v1222, 0.01
  %v1307 = vmul.f32 %v1227, 0.01
  %v1308 = vmul.f32 %v1230, 0.01
  %v1309 = vmul.f32 %v1235, 0.01
  %v1310 = vmul.f32 %v1238, 0.01
  %v1311 = vmul.f32 %v1243, 0.01
  %v1312 = vmul.f32 %v1246, 0.01
  %v1313 = vsel %vm1249, %v1123, %v1281
  %v1314 = vsel %vm1250, %v1126, %v1282
  %v1315 = vsel %vm1251, %v1131, %v1283
  %v1316 = vsel %vm1252, %v1134, %v1284
  %v1317 = vsel %vm1253, %v1139, %v1285
  %v1318 = vsel %vm1254, %v1142, %v1286
  %v1319 = vsel %vm1255, %v1147, %v1287
  %v1320 = vsel %vm1256, %v1150, %v1288
  %v1321 = vsel %vm1257, %v1155, %v1289
  %v1322 = vsel %vm1258, %v1158, %v1290
  %v1323 = vsel %vm1259, %v1163, %v1291
  %v1324 = vsel %vm1260, %v1166, %v1292
  %v1325 = vsel %vm1261, %v1171, %v1293
  %v1326 = vsel %vm1262, %v1174, %v1294
  %v1327 = vsel %vm1263, %v1179, %v1295
  %v1328 = vsel %vm1264, %v1182, %v1296
  %v1329 = vsel %vm1265, %v1187, %v1297
  %v1330 = vsel %vm1266, %v1190, %v1298
  %v1331 = vsel %vm1267, %v1195, %v1299
  %v1332 = vsel %vm1268, %v1198, %v1300
  %v1333 = vsel %vm1269, %v1203, %v1301
  %v1334 = vsel %vm1270, %v1206, %v1302
  %v1335 = vsel %vm1271, %v1211, %v1303
  %v1336 = vsel %vm1272, %v1214, %v1304
  %v1337 = vsel %vm1273, %v1219, %v1305
  %v1338 = vsel %vm1274, %v1222, %v1306
  %v1339 = vsel %vm1275, %v1227, %v1307
  %v1340 = vsel %vm1276, %v1230, %v1308
  %v1341 = vsel %vm1277, %v1235, %v1309
  %v1342 = vsel %vm1278, %v1238, %v1310
  %v1343 = vsel %vm1279, %v1243, %v1311
  %v1344 = vsel %vm1280, %v1246, %v1312
  %v1345 = vpack.c.bf16 %v986, %v985
  %v1346 = vpack.c.bf16 %v988, %v987
  %v1347 = vpack.c.bf16 %v990, %v989
  %v1348 = vpack.c.bf16 %v992, %v991
  %v1349 = vpack.c.bf16 %v994, %v993
  %v1350 = vpack.c.bf16 %v996, %v995
  %v1351 = vpack.c.bf16 %v998, %v997
  %v1352 = vpack.c.bf16 %v1000, %v999
  %v1353 = vpack.c.bf16 %v1002, %v1001
  %v1354 = vpack.c.bf16 %v1004, %v1003
  %v1355 = vpack.c.bf16 %v1006, %v1005
  %v1356 = vpack.c.bf16 %v1008, %v1007
  %v1357 = vpack.c.bf16 %v1010, %v1009
  %v1358 = vpack.c.bf16 %v1012, %v1011
  %v1359 = vpack.c.bf16 %v1014, %v1013
  %v1360 = vpack.c.bf16 %v1016, %v1015
  %v1361 = vpack.c.bf16 %v1314, %v1313
  %v1362 = vpack.c.bf16 %v1316, %v1315
  %v1363 = vpack.c.bf16 %v1318, %v1317
  %v1364 = vpack.c.bf16 %v1320, %v1319
  %v1365 = vpack.c.bf16 %v1322, %v1321
  %v1366 = vpack.c.bf16 %v1324, %v1323
  %v1367 = vpack.c.bf16 %v1326, %v1325
  %v1368 = vpack.c.bf16 %v1328, %v1327
  %v1369 = vpack.c.bf16 %v1330, %v1329
  %v1370 = vpack.c.bf16 %v1332, %v1331
  %v1371 = vpack.c.bf16 %v1334, %v1333
  %v1372 = vpack.c.bf16 %v1336, %v1335
  %v1373 = vpack.c.bf16 %v1338, %v1337
  %v1374 = vpack.c.bf16 %v1340, %v1339
  %v1375 = vpack.c.bf16 %v1342, %v1341
  %v1376 = vpack.c.bf16 %v1344, %v1343
  %v1377 = vld [vmem:[%s8] sm:$0xf]
  %v1378 = vld [vmem:[%s8 + $0x4] sm:$0xf]
  %v1379 = vld [vmem:[%s8 + $0x8] sm:$0xf]
  %v1380 = vld [vmem:[%s8 + $0xc] sm:$0xf]
  %v1381 = vld [vmem:[%s8 + $0x10] sm:$0xf]
  %v1382 = vld [vmem:[%s8 + $0x14] sm:$0xf]
  %v1383 = vld [vmem:[%s8 + $0x18] sm:$0xf]
  %v1384 = vld [vmem:[%s8 + $0x1c] sm:$0xf]
  %v1385 = vld [vmem:[%s8 + $0x20] sm:$0xf]
  %v1386 = vld [vmem:[%s8 + $0x24] sm:$0xf]
  %v1387 = vld [vmem:[%s8 + $0x28] sm:$0xf]
  %v1388 = vld [vmem:[%s8 + $0x2c] sm:$0xf]
  %v1389 = vld [vmem:[%s8 + $0x30] sm:$0xf]
  %v1390 = vld [vmem:[%s8 + $0x34] sm:$0xf]
  %v1391 = vld [vmem:[%s8 + $0x38] sm:$0xf]
  %v1392 = vld [vmem:[%s8 + $0x3c] sm:$0xf]
  %v1393 = vld [vmem:[%s8 + $0x40] sm:$0xf]
  %v1394 = vld [vmem:[%s8 + $0x44] sm:$0xf]
  %v1395 = vld [vmem:[%s8 + $0x48] sm:$0xf]
  %v1396 = vld [vmem:[%s8 + $0x4c] sm:$0xf]
  %v1397 = vld [vmem:[%s8 + $0x50] sm:$0xf]
  %v1398 = vld [vmem:[%s8 + $0x54] sm:$0xf]
  %v1399 = vld [vmem:[%s8 + $0x58] sm:$0xf]
  %v1400 = vld [vmem:[%s8 + $0x5c] sm:$0xf]
  %v1401 = vld [vmem:[%s8 + $0x60] sm:$0xf]
  %v1402 = vld [vmem:[%s8 + $0x64] sm:$0xf]
  %v1403 = vld [vmem:[%s8 + $0x68] sm:$0xf]
  %v1404 = vld [vmem:[%s8 + $0x6c] sm:$0xf]
  %v1405 = vld [vmem:[%s8 + $0x70] sm:$0xf]
  %v1406 = vld [vmem:[%s8 + $0x74] sm:$0xf]
  %v1407 = vld [vmem:[%s8 + $0x78] sm:$0xf]
  %v1408 = vld [vmem:[%s8 + $0x7c] sm:$0xf]
  %v1409 = vld [vmem:[%s9] sm:$0x1]
  %v1411 = vlaneseq
  %v1412 = vshrl.u32 %v1411, 7
  %v1413 = vsub.s32 0, %v1412
  %v1414 = vrot.slane %v1409, %v1413
  %v1448 = vunpack.c.l.b16 %v1377
  %v1449 = vunpack.c.l.b16 %v1378
  %v1450 = vunpack.c.l.b16 %v1379
  %v1451 = vunpack.c.l.b16 %v1380
  %v1452 = vunpack.c.l.b16 %v1381
  %v1453 = vunpack.c.l.b16 %v1382
  %v1454 = vunpack.c.l.b16 %v1383
  %v1455 = vunpack.c.l.b16 %v1384
  %v1456 = vunpack.c.l.b16 %v1385
  %v1457 = vunpack.c.l.b16 %v1386
  %v1458 = vunpack.c.l.b16 %v1387
  %v1459 = vunpack.c.l.b16 %v1388
  %v1460 = vunpack.c.l.b16 %v1389
  %v1461 = vunpack.c.l.b16 %v1390
  %v1462 = vunpack.c.l.b16 %v1391
  %v1463 = vunpack.c.l.b16 %v1392
  %v1464 = vunpack.c.l.b16 %v1393
  %v1465 = vunpack.c.l.b16 %v1394
  %v1466 = vunpack.c.l.b16 %v1395
  %v1467 = vunpack.c.l.b16 %v1396
  %v1468 = vunpack.c.l.b16 %v1397
  %v1469 = vunpack.c.l.b16 %v1398
  %v1470 = vunpack.c.l.b16 %v1399
  %v1471 = vunpack.c.l.b16 %v1400
  %v1472 = vunpack.c.l.b16 %v1401
  %v1473 = vunpack.c.l.b16 %v1402
  %v1474 = vunpack.c.l.b16 %v1403
  %v1475 = vunpack.c.l.b16 %v1404
  %v1476 = vunpack.c.l.b16 %v1405
  %v1477 = vunpack.c.l.b16 %v1406
  %v1478 = vunpack.c.l.b16 %v1407
  %v1479 = vunpack.c.l.b16 %v1408
  %v1480 = vpack.c.b16 %v1449, %v1448
  %v1481 = vpack.c.b16 %v1451, %v1450
  %v1482 = vpack.c.b16 %v1453, %v1452
  %v1483 = vpack.c.b16 %v1455, %v1454
  %v1484 = vpack.c.b16 %v1457, %v1456
  %v1485 = vpack.c.b16 %v1459, %v1458
  %v1486 = vpack.c.b16 %v1461, %v1460
  %v1487 = vpack.c.b16 %v1463, %v1462
  %v1488 = vpack.c.b16 %v1465, %v1464
  %v1489 = vpack.c.b16 %v1467, %v1466
  %v1490 = vpack.c.b16 %v1469, %v1468
  %v1491 = vpack.c.b16 %v1471, %v1470
  %v1492 = vpack.c.b16 %v1473, %v1472
  %v1493 = vpack.c.b16 %v1475, %v1474
  %v1494 = vpack.c.b16 %v1477, %v1476
  %v1495 = vpack.c.b16 %v1479, %v1478
  %1512 = vmatprep.subr.bf16.mxu0 0
  %1513 = vmatpush1.bf16.msra.mxu0 %v1480
  %1514 = vmatprep.subr.bf16.mxu0 0
  %1515 = vmatpush1.bf16.msra.mxu0 %v1481
  %1516 = vmatprep.subr.bf16.mxu0 0
  %1517 = vmatpush1.bf16.msra.mxu0 %v1482
  %1518 = vmatprep.subr.bf16.mxu0 0
  %1519 = vmatpush1.bf16.msra.mxu0 %v1483
  %1520 = vmatprep.subr.bf16.mxu0 0
  %1521 = vmatpush1.bf16.msra.mxu0 %v1484
  %1522 = vmatprep.subr.bf16.mxu0 0
  %1523 = vmatpush1.bf16.msra.mxu0 %v1485
  %1524 = vmatprep.subr.bf16.mxu0 0
  %1525 = vmatpush1.bf16.msra.mxu0 %v1486
  %1526 = vmatprep.subr.bf16.mxu0 0
  %1527 = vmatpush1.bf16.msra.mxu0 %v1487
  %1528 = vmatprep.subr.bf16.mxu0 0
  %1529 = vmatpush1.bf16.msra.mxu0 %v1488
  %1530 = vmatprep.subr.bf16.mxu0 0
  %1531 = vmatpush1.bf16.msra.mxu0 %v1489
  %1532 = vmatprep.subr.bf16.mxu0 0
  %1533 = vmatpush1.bf16.msra.mxu0 %v1490
  %1534 = vmatprep.subr.bf16.mxu0 0
  %1535 = vmatpush1.bf16.msra.mxu0 %v1491
  %1536 = vmatprep.subr.bf16.mxu0 0
  %1537 = vmatpush1.bf16.msra.mxu0 %v1492
  %1538 = vmatprep.subr.bf16.mxu0 0
  %1539 = vmatpush1.bf16.msra.mxu0 %v1493
  %1540 = vmatprep.subr.bf16.mxu0 0
  %1541 = vmatpush1.bf16.msra.mxu0 %v1494
  %1542 = vmatprep.subr.bf16.mxu0 0
  %1543 = vmatpush1.bf16.msra.mxu0 %v1495
  %1544 = vmatprep.mubr.bf16.mxu0 %v1361
  %1545 = vmatmul.mubr.bf16.gmra.mrb[0].mxu0 %v1345
  %v1546 = vpop.f32.mrb[0].mxu0
  %v1547 = vadd.f32 %v1414, %v1546
  %v1548 = vpop.f32.mrb[0].mxu0
  %v1549 = vpop.f32.mrb[0].mxu0
  %v1550 = vadd.f32 %v1414, %v1549
  %v1551 = vpop.f32.mrb[0].mxu0
  %1552 = vmatprep.mubr.bf16.mxu0 %v1362
  %1553 = vmatmul.mubr.bf16.gmra.mrb[0].mxu0 %v1346
  %v1554 = vpop.f32.mrb[0].mxu0
  %v1555 = vadd.f32 %v1414, %v1554
  %v1556 = vpop.f32.mrb[0].mxu0
  %v1557 = vpop.f32.mrb[0].mxu0
  %v1558 = vadd.f32 %v1414, %v1557
  %v1559 = vpop.f32.mrb[0].mxu0
  %1560 = vmatprep.mubr.bf16.mxu0 %v1363
  %1561 = vmatmul.mubr.bf16.gmra.mrb[0].mxu0 %v1347
  %v1562 = vpop.f32.mrb[0].mxu0
  %v1563 = vadd.f32 %v1414, %v1562
  %v1564 = vpop.f32.mrb[0].mxu0
  %v1565 = vpop.f32.mrb[0].mxu0
  %v1566 = vadd.f32 %v1414, %v1565
  %v1567 = vpop.f32.mrb[0].mxu0
  %1568 = vmatprep.mubr.bf16.mxu0 %v1364
  %1569 = vmatmul.mubr.bf16.gmra.mrb[0].mxu0 %v1348
  %v1570 = vpop.f32.mrb[0].mxu0
  %v1571 = vadd.f32 %v1414, %v1570
  %v1572 = vpop.f32.mrb[0].mxu0
  %v1573 = vpop.f32.mrb[0].mxu0
  %v1574 = vadd.f32 %v1414, %v1573
  %v1575 = vpop.f32.mrb[0].mxu0
  %1576 = vmatprep.mubr.bf16.mxu0 %v1365
  %1577 = vmatmul.mubr.bf16.gmra.mrb[0].mxu0 %v1349
  %v1578 = vpop.f32.mrb[0].mxu0
  %v1579 = vadd.f32 %v1414, %v1578
  %v1580 = vpop.f32.mrb[0].mxu0
  %v1581 = vpop.f32.mrb[0].mxu0
  %v1582 = vadd.f32 %v1414, %v1581
  %v1583 = vpop.f32.mrb[0].mxu0
  %1584 = vmatprep.mubr.bf16.mxu0 %v1366
  %1585 = vmatmul.mubr.bf16.gmra.mrb[0].mxu0 %v1350
  %v1586 = vpop.f32.mrb[0].mxu0
  %v1587 = vadd.f32 %v1414, %v1586
  %v1588 = vpop.f32.mrb[0].mxu0
  %v1589 = vpop.f32.mrb[0].mxu0
  %v1590 = vadd.f32 %v1414, %v1589
  %v1591 = vpop.f32.mrb[0].mxu0
  %1592 = vmatprep.mubr.bf16.mxu0 %v1367
  %1593 = vmatmul.mubr.bf16.gmra.mrb[0].mxu0 %v1351
  %v1594 = vpop.f32.mrb[0].mxu0
  %v1595 = vadd.f32 %v1414, %v1594
  %v1596 = vpop.f32.mrb[0].mxu0
  %v1597 = vpop.f32.mrb[0].mxu0
  %v1598 = vadd.f32 %v1414, %v1597
  %v1599 = vpop.f32.mrb[0].mxu0
  %1600 = vmatprep.mubr.bf16.mxu0 %v1368
  %1601 = vmatmul.mubr.bf16.gmra.mrb[0].mxu0 %v1352
  %v1602 = vpop.f32.mrb[0].mxu0
  %v1603 = vadd.f32 %v1414, %v1602
  %v1604 = vpop.f32.mrb[0].mxu0
  %v1605 = vpop.f32.mrb[0].mxu0
  %v1606 = vadd.f32 %v1414, %v1605
  %v1607 = vpop.f32.mrb[0].mxu0
  %1608 = vmatprep.mubr.bf16.mxu0 %v1369
  %1609 = vmatmul.mubr.bf16.gmra.mrb[0].mxu0 %v1353
  %v1610 = vpop.f32.mrb[0].mxu0
  %v1611 = vadd.f32 %v1414, %v1610
  %v1612 = vpop.f32.mrb[0].mxu0
  %v1613 = vpop.f32.mrb[0].mxu0
  %v1614 = vadd.f32 %v1414, %v1613
  %v1615 = vpop.f32.mrb[0].mxu0
  %1616 = vmatprep.mubr.bf16.mxu0 %v1370
  %1617 = vmatmul.mubr.bf16.gmra.mrb[0].mxu0 %v1354
  %v1618 = vpop.f32.mrb[0].mxu0
  %v1619 = vadd.f32 %v1414, %v1618
  %v1620 = vpop.f32.mrb[0].mxu0
  %v1621 = vpop.f32.mrb[0].mxu0
  %v1622 = vadd.f32 %v1414, %v1621
  %v1623 = vpop.f32.mrb[0].mxu0
  %1624 = vmatprep.mubr.bf16.mxu0 %v1371
  %1625 = vmatmul.mubr.bf16.gmra.mrb[0].mxu0 %v1355
  %v1626 = vpop.f32.mrb[0].mxu0
  %v1627 = vadd.f32 %v1414, %v1626
  %v1628 = vpop.f32.mrb[0].mxu0
  %v1629 = vpop.f32.mrb[0].mxu0
  %v1630 = vadd.f32 %v1414, %v1629
  %v1631 = vpop.f32.mrb[0].mxu0
  %1632 = vmatprep.mubr.bf16.mxu0 %v1372
  %1633 = vmatmul.mubr.bf16.gmra.mrb[0].mxu0 %v1356
  %v1634 = vpop.f32.mrb[0].mxu0
  %v1635 = vadd.f32 %v1414, %v1634
  %v1636 = vpop.f32.mrb[0].mxu0
  %v1637 = vpop.f32.mrb[0].mxu0
  %v1638 = vadd.f32 %v1414, %v1637
  %v1639 = vpop.f32.mrb[0].mxu0
  %1640 = vmatprep.mubr.bf16.mxu0 %v1373
  %1641 = vmatmul.mubr.bf16.gmra.mrb[0].mxu0 %v1357
  %v1642 = vpop.f32.mrb[0].mxu0
  %v1643 = vadd.f32 %v1414, %v1642
  %v1644 = vpop.f32.mrb[0].mxu0
  %v1645 = vpop.f32.mrb[0].mxu0
  %v1646 = vadd.f32 %v1414, %v1645
  %v1647 = vpop.f32.mrb[0].mxu0
  %1648 = vmatprep.mubr.bf16.mxu0 %v1374
  %1649 = vmatmul.mubr.bf16.gmra.mrb[0].mxu0 %v1358
  %v1650 = vpop.f32.mrb[0].mxu0
  %v1651 = vadd.f32 %v1414, %v1650
  %v1652 = vpop.f32.mrb[0].mxu0
  %v1653 = vpop.f32.mrb[0].mxu0
  %v1654 = vadd.f32 %v1414, %v1653
  %v1655 = vpop.f32.mrb[0].mxu0
  %1656 = vmatprep.mubr.bf16.mxu0 %v1375
  %1657 = vmatmul.mubr.bf16.gmra.mrb[0].mxu0 %v1359
  %v1658 = vpop.f32.mrb[0].mxu0
  %v1659 = vadd.f32 %v1414, %v1658
  %v1660 = vpop.f32.mrb[0].mxu0
  %v1661 = vpop.f32.mrb[0].mxu0
  %v1662 = vadd.f32 %v1414, %v1661
  %v1663 = vpop.f32.mrb[0].mxu0
  %1664 = vmatprep.mubr.bf16.mxu0 %v1376
  %1665 = vmatmul.mubr.bf16.gmra.mrb[0].mxu0 %v1360
  %v1666 = vpop.f32.mrb[0].mxu0
  %v1667 = vadd.f32 %v1414, %v1666
  %v1668 = vpop.f32.mrb[0].mxu0
  %v1669 = vpop.f32.mrb[0].mxu0
  %v1670 = vadd.f32 %v1414, %v1669
  %v1671 = vpop.f32.mrb[0].mxu0
  %1672 = vdwg.mxu0
  %v1673 = vlaneseq
  %v1674 = vshrl.u32 %v1673, 7
  %v1675 = vadd.s32 %v1674, 8
  %v1676 = vadd.s32 %v1674, 16
  %v1677 = vadd.s32 %v1674, 24
  %v1678 = vadd.s32 %v1674, 32
  %v1679 = vadd.s32 %v1674, 40
  %v1680 = vadd.s32 %v1674, 48
  %v1681 = vadd.s32 %v1674, 56
  %v1682 = vadd.s32 %v1674, 64
  %v1683 = vadd.s32 %v1674, 72
  %v1684 = vadd.s32 %v1674, 80
  %v1685 = vadd.s32 %v1674, 88
  %v1686 = vadd.s32 %v1674, 96
  %v1687 = vadd.s32 %v1674, 104
  %v1688 = vadd.s32 %v1674, 112
  %v1689 = vadd.s32 %v1674, 120
  %v1690 = vadd.s32 %v1674, 128
  %v1691 = vadd.s32 %v1674, 136
  %v1692 = vadd.s32 %v1674, 144
  %v1693 = vadd.s32 %v1674, 152
  %v1694 = vadd.s32 %v1674, 160
  %v1695 = vadd.s32 %v1674, 168
  %v1696 = vadd.s32 %v1674, 176
  %v1697 = vadd.s32 %v1674, 184
  %v1698 = vadd.s32 %v1674, 192
  %v1699 = vadd.s32 %v1674, 200
  %v1700 = vadd.s32 %v1674, 208
  %v1701 = vadd.s32 %v1674, 216
  %v1702 = vadd.s32 %v1674, 224
  %v1703 = vadd.s32 %v1674, 232
  %v1704 = vadd.s32 %v1674, 240
  %v1705 = vadd.s32 %v1674, 248
  %v1706 = vlaneseq
  %v1707 = vand.u32 %v1706, 127
  %v1708 = vadd.s32 %v1707, 128
  %vm1709 = vcmp.eq.s32.totalorder %v1674, %v1707
  %vm1710 = vcmp.eq.s32.totalorder %v1674, %v1708
  %vm1711 = vcmp.eq.s32.totalorder %v1675, %v1707
  %vm1712 = vcmp.eq.s32.totalorder %v1675, %v1708
  %vm1713 = vcmp.eq.s32.totalorder %v1676, %v1707
  %vm1714 = vcmp.eq.s32.totalorder %v1676, %v1708
  %vm1715 = vcmp.eq.s32.totalorder %v1677, %v1707
  %vm1716 = vcmp.eq.s32.totalorder %v1677, %v1708
  %vm1717 = vcmp.eq.s32.totalorder %v1678, %v1707
  %vm1718 = vcmp.eq.s32.totalorder %v1678, %v1708
  %vm1719 = vcmp.eq.s32.totalorder %v1679, %v1707
  %vm1720 = vcmp.eq.s32.totalorder %v1679, %v1708
  %vm1721 = vcmp.eq.s32.totalorder %v1680, %v1707
  %vm1722 = vcmp.eq.s32.totalorder %v1680, %v1708
  %vm1723 = vcmp.eq.s32.totalorder %v1681, %v1707
  %vm1724 = vcmp.eq.s32.totalorder %v1681, %v1708
  %vm1725 = vcmp.eq.s32.totalorder %v1682, %v1707
  %vm1726 = vcmp.eq.s32.totalorder %v1682, %v1708
  %vm1727 = vcmp.eq.s32.totalorder %v1683, %v1707
  %vm1728 = vcmp.eq.s32.totalorder %v1683, %v1708
  %vm1729 = vcmp.eq.s32.totalorder %v1684, %v1707
  %vm1730 = vcmp.eq.s32.totalorder %v1684, %v1708
  %vm1731 = vcmp.eq.s32.totalorder %v1685, %v1707
  %vm1732 = vcmp.eq.s32.totalorder %v1685, %v1708
  %vm1733 = vcmp.eq.s32.totalorder %v1686, %v1707
  %vm1734 = vcmp.eq.s32.totalorder %v1686, %v1708
  %vm1735 = vcmp.eq.s32.totalorder %v1687, %v1707
  %vm1736 = vcmp.eq.s32.totalorder %v1687, %v1708
  %vm1737 = vcmp.eq.s32.totalorder %v1688, %v1707
  %vm1738 = vcmp.eq.s32.totalorder %v1688, %v1708
  %vm1739 = vcmp.eq.s32.totalorder %v1689, %v1707
  %vm1740 = vcmp.eq.s32.totalorder %v1689, %v1708
  %vm1741 = vcmp.eq.s32.totalorder %v1690, %v1707
  %vm1742 = vcmp.eq.s32.totalorder %v1690, %v1708
  %vm1743 = vcmp.eq.s32.totalorder %v1691, %v1707
  %vm1744 = vcmp.eq.s32.totalorder %v1691, %v1708
  %vm1745 = vcmp.eq.s32.totalorder %v1692, %v1707
  %vm1746 = vcmp.eq.s32.totalorder %v1692, %v1708
  %vm1747 = vcmp.eq.s32.totalorder %v1693, %v1707
  %vm1748 = vcmp.eq.s32.totalorder %v1693, %v1708
  %vm1749 = vcmp.eq.s32.totalorder %v1694, %v1707
  %vm1750 = vcmp.eq.s32.totalorder %v1694, %v1708
  %vm1751 = vcmp.eq.s32.totalorder %v1695, %v1707
  %vm1752 = vcmp.eq.s32.totalorder %v1695, %v1708
  %vm1753 = vcmp.eq.s32.totalorder %v1696, %v1707
  %vm1754 = vcmp.eq.s32.totalorder %v1696, %v1708
  %vm1755 = vcmp.eq.s32.totalorder %v1697, %v1707
  %vm1756 = vcmp.eq.s32.totalorder %v1697, %v1708
  %vm1757 = vcmp.eq.s32.totalorder %v1698, %v1707
  %vm1758 = vcmp.eq.s32.totalorder %v1698, %v1708
  %vm1759 = vcmp.eq.s32.totalorder %v1699, %v1707
  %vm1760 = vcmp.eq.s32.totalorder %v1699, %v1708
  %vm1761 = vcmp.eq.s32.totalorder %v1700, %v1707
  %vm1762 = vcmp.eq.s32.totalorder %v1700, %v1708
  %vm1763 = vcmp.eq.s32.totalorder %v1701, %v1707
  %vm1764 = vcmp.eq.s32.totalorder %v1701, %v1708
  %vm1765 = vcmp.eq.s32.totalorder %v1702, %v1707
  %vm1766 = vcmp.eq.s32.totalorder %v1702, %v1708
  %vm1767 = vcmp.eq.s32.totalorder %v1703, %v1707
  %vm1768 = vcmp.eq.s32.totalorder %v1703, %v1708
  %vm1769 = vcmp.eq.s32.totalorder %v1704, %v1707
  %vm1770 = vcmp.eq.s32.totalorder %v1704, %v1708
  %vm1771 = vcmp.eq.s32.totalorder %v1705, %v1707
  %vm1772 = vcmp.eq.s32.totalorder %v1705, %v1708
  %1774 = vset.pattern.permute.xlu0 0
  %1775 = vperm.xlu0 %1774, %v1547
  %v1776 = vpop.permute.xlu0 %1775
  %1779 = vset.pattern.permute.xlu0 0
  %1780 = vperm.xlu0 %1779, %v1550
  %v1781 = vpop.permute.xlu0 %1780
  %1784 = vset.pattern.permute.xlu0 0
  %1785 = vperm.xlu0 %1784, %v1555
  %v1786 = vpop.permute.xlu0 %1785
  %1789 = vset.pattern.permute.xlu0 0
  %1790 = vperm.xlu0 %1789, %v1558
  %v1791 = vpop.permute.xlu0 %1790
  %1794 = vset.pattern.permute.xlu0 0
  %1795 = vperm.xlu0 %1794, %v1563
  %v1796 = vpop.permute.xlu0 %1795
  %1799 = vset.pattern.permute.xlu0 0
  %1800 = vperm.xlu0 %1799, %v1566
  %v1801 = vpop.permute.xlu0 %1800
  %1804 = vset.pattern.permute.xlu0 0
  %1805 = vperm.xlu0 %1804, %v1571
  %v1806 = vpop.permute.xlu0 %1805
  %1809 = vset.pattern.permute.xlu0 0
  %1810 = vperm.xlu0 %1809, %v1574
  %v1811 = vpop.permute.xlu0 %1810
  %1814 = vset.pattern.permute.xlu0 0
  %1815 = vperm.xlu0 %1814, %v1579
  %v1816 = vpop.permute.xlu0 %1815
  %1819 = vset.pattern.permute.xlu0 0
  %1820 = vperm.xlu0 %1819, %v1582
  %v1821 = vpop.permute.xlu0 %1820
  %1824 = vset.pattern.permute.xlu0 0
  %1825 = vperm.xlu0 %1824, %v1587
  %v1826 = vpop.permute.xlu0 %1825
  %1829 = vset.pattern.permute.xlu0 0
  %1830 = vperm.xlu0 %1829, %v1590
  %v1831 = vpop.permute.xlu0 %1830
  %1834 = vset.pattern.permute.xlu0 0
  %1835 = vperm.xlu0 %1834, %v1595
  %v1836 = vpop.permute.xlu0 %1835
  %1839 = vset.pattern.permute.xlu0 0
  %1840 = vperm.xlu0 %1839, %v1598
  %v1841 = vpop.permute.xlu0 %1840
  %1844 = vset.pattern.permute.xlu0 0
  %1845 = vperm.xlu0 %1844, %v1603
  %v1846 = vpop.permute.xlu0 %1845
  %1849 = vset.pattern.permute.xlu0 0
  %1850 = vperm.xlu0 %1849, %v1606
  %v1851 = vpop.permute.xlu0 %1850
  %1854 = vset.pattern.permute.xlu0 0
  %1855 = vperm.xlu0 %1854, %v1611
  %v1856 = vpop.permute.xlu0 %1855
  %1859 = vset.pattern.permute.xlu0 0
  %1860 = vperm.xlu0 %1859, %v1614
  %v1861 = vpop.permute.xlu0 %1860
  %1864 = vset.pattern.permute.xlu0 0
  %1865 = vperm.xlu0 %1864, %v1619
  %v1866 = vpop.permute.xlu0 %1865
  %1869 = vset.pattern.permute.xlu0 0
  %1870 = vperm.xlu0 %1869, %v1622
  %v1871 = vpop.permute.xlu0 %1870
  %1874 = vset.pattern.permute.xlu0 0
  %1875 = vperm.xlu0 %1874, %v1627
  %v1876 = vpop.permute.xlu0 %1875
  %1879 = vset.pattern.permute.xlu0 0
  %1880 = vperm.xlu0 %1879, %v1630
  %v1881 = vpop.permute.xlu0 %1880
  %1884 = vset.pattern.permute.xlu0 0
  %1885 = vperm.xlu0 %1884, %v1635
  %v1886 = vpop.permute.xlu0 %1885
  %1889 = vset.pattern.permute.xlu0 0
  %1890 = vperm.xlu0 %1889, %v1638
  %v1891 = vpop.permute.xlu0 %1890
  %1894 = vset.pattern.permute.xlu0 0
  %1895 = vperm.xlu0 %1894, %v1643
  %v1896 = vpop.permute.xlu0 %1895
  %1899 = vset.pattern.permute.xlu0 0
  %1900 = vperm.xlu0 %1899, %v1646
  %v1901 = vpop.permute.xlu0 %1900
  %1904 = vset.pattern.permute.xlu0 0
  %1905 = vperm.xlu0 %1904, %v1651
  %v1906 = vpop.permute.xlu0 %1905
  %1909 = vset.pattern.permute.xlu0 0
  %1910 = vperm.xlu0 %1909, %v1654
  %v1911 = vpop.permute.xlu0 %1910
  %1914 = vset.pattern.permute.xlu0 0
  %1915 = vperm.xlu0 %1914, %v1659
  %v1916 = vpop.permute.xlu0 %1915
  %1919 = vset.pattern.permute.xlu0 0
  %1920 = vperm.xlu0 %1919, %v1662
  %v1921 = vpop.permute.xlu0 %1920
  %1924 = vset.pattern.permute.xlu0 0
  %1925 = vperm.xlu0 %1924, %v1667
  %v1926 = vpop.permute.xlu0 %1925
  %1929 = vset.pattern.permute.xlu0 0
  %1930 = vperm.xlu0 %1929, %v1670
  %v1931 = vpop.permute.xlu0 %1930
  %v1933 = vsel %vm1709, %v1776, 0.0
  %v1934 = vsel %vm1710, %v1776, 0.0
  %v1935 = vsel %vm1711, %v1781, 0.0
  %v1936 = vsel %vm1712, %v1781, 0.0
  %v1937 = vsel %vm1713, %v1786, 0.0
  %v1938 = vsel %vm1714, %v1786, 0.0
  %v1939 = vsel %vm1715, %v1791, 0.0
  %v1940 = vsel %vm1716, %v1791, 0.0
  %v1941 = vsel %vm1717, %v1796, 0.0
  %v1942 = vsel %vm1718, %v1796, 0.0
  %v1943 = vsel %vm1719, %v1801, 0.0
  %v1944 = vsel %vm1720, %v1801, 0.0
  %v1945 = vsel %vm1721, %v1806, 0.0
  %v1946 = vsel %vm1722, %v1806, 0.0
  %v1947 = vsel %vm1723, %v1811, 0.0
  %v1948 = vsel %vm1724, %v1811, 0.0
  %v1949 = vsel %vm1725, %v1816, 0.0
  %v1950 = vsel %vm1726, %v1816, 0.0
  %v1951 = vsel %vm1727, %v1821, 0.0
  %v1952 = vsel %vm1728, %v1821, 0.0
  %v1953 = vsel %vm1729, %v1826, 0.0
  %v1954 = vsel %vm1730, %v1826, 0.0
  %v1955 = vsel %vm1731, %v1831, 0.0
  %v1956 = vsel %vm1732, %v1831, 0.0
  %v1957 = vsel %vm1733, %v1836, 0.0
  %v1958 = vsel %vm1734, %v1836, 0.0
  %v1959 = vsel %vm1735, %v1841, 0.0
  %v1960 = vsel %vm1736, %v1841, 0.0
  %v1961 = vsel %vm1737, %v1846, 0.0
  %v1962 = vsel %vm1738, %v1846, 0.0
  %v1963 = vsel %vm1739, %v1851, 0.0
  %v1964 = vsel %vm1740, %v1851, 0.0
  %v1965 = vsel %vm1741, %v1856, 0.0
  %v1966 = vsel %vm1742, %v1856, 0.0
  %v1967 = vsel %vm1743, %v1861, 0.0
  %v1968 = vsel %vm1744, %v1861, 0.0
  %v1969 = vsel %vm1745, %v1866, 0.0
  %v1970 = vsel %vm1746, %v1866, 0.0
  %v1971 = vsel %vm1747, %v1871, 0.0
  %v1972 = vsel %vm1748, %v1871, 0.0
  %v1973 = vsel %vm1749, %v1876, 0.0
  %v1974 = vsel %vm1750, %v1876, 0.0
  %v1975 = vsel %vm1751, %v1881, 0.0
  %v1976 = vsel %vm1752, %v1881, 0.0
  %v1977 = vsel %vm1753, %v1886, 0.0
  %v1978 = vsel %vm1754, %v1886, 0.0
  %v1979 = vsel %vm1755, %v1891, 0.0
  %v1980 = vsel %vm1756, %v1891, 0.0
  %v1981 = vsel %vm1757, %v1896, 0.0
  %v1982 = vsel %vm1758, %v1896, 0.0
  %v1983 = vsel %vm1759, %v1901, 0.0
  %v1984 = vsel %vm1760, %v1901, 0.0
  %v1985 = vsel %vm1761, %v1906, 0.0
  %v1986 = vsel %vm1762, %v1906, 0.0
  %v1987 = vsel %vm1763, %v1911, 0.0
  %v1988 = vsel %vm1764, %v1911, 0.0
  %v1989 = vsel %vm1765, %v1916, 0.0
  %v1990 = vsel %vm1766, %v1916, 0.0
  %v1991 = vsel %vm1767, %v1921, 0.0
  %v1992 = vsel %vm1768, %v1921, 0.0
  %v1993 = vsel %vm1769, %v1926, 0.0
  %v1994 = vsel %vm1770, %v1926, 0.0
  %v1995 = vsel %vm1771, %v1931, 0.0
  %v1996 = vsel %vm1772, %v1931, 0.0
  %v1997 = vadd.f32 %v1933, %v1935
  %v1998 = vadd.f32 %v1997, %v1937
  %v1999 = vadd.f32 %v1998, %v1939
  %v2000 = vadd.f32 %v1999, %v1941
  %v2001 = vadd.f32 %v2000, %v1943
  %v2002 = vadd.f32 %v2001, %v1945
  %v2003 = vadd.f32 %v2002, %v1947
  %v2004 = vadd.f32 %v2003, %v1949
  %v2005 = vadd.f32 %v2004, %v1951
  %v2006 = vadd.f32 %v2005, %v1953
  %v2007 = vadd.f32 %v2006, %v1955
  %v2008 = vadd.f32 %v2007, %v1957
  %v2009 = vadd.f32 %v2008, %v1959
  %v2010 = vadd.f32 %v2009, %v1961
  %v2011 = vadd.f32 %v2010, %v1963
  %v2012 = vadd.f32 %v2011, %v1965
  %v2013 = vadd.f32 %v2012, %v1967
  %v2014 = vadd.f32 %v2013, %v1969
  %v2015 = vadd.f32 %v2014, %v1971
  %v2016 = vadd.f32 %v2015, %v1973
  %v2017 = vadd.f32 %v2016, %v1975
  %v2018 = vadd.f32 %v2017, %v1977
  %v2019 = vadd.f32 %v2018, %v1979
  %v2020 = vadd.f32 %v2019, %v1981
  %v2021 = vadd.f32 %v2020, %v1983
  %v2022 = vadd.f32 %v2021, %v1985
  %v2023 = vadd.f32 %v2022, %v1987
  %v2024 = vadd.f32 %v2023, %v1989
  %v2025 = vadd.f32 %v2024, %v1991
  %v2026 = vadd.f32 %v2025, %v1993
  %v2027 = vadd.f32 %v2026, %v1995
  %v2028 = vrot.slane %v2027, 4
  %v2029 = vadd.f32 %v2027, %v2028
  %v2030 = vrot.slane %v2029, 2
  %v2031 = vadd.f32 %v2029, %v2030
  %v2032 = vrot.slane %v2031, 1
  %v2033 = vadd.f32 %v2031, %v2032
  %v2034 = vadd.f32 %v1934, %v1936
  %v2035 = vadd.f32 %v2034, %v1938
  %v2036 = vadd.f32 %v2035, %v1940
  %v2037 = vadd.f32 %v2036, %v1942
  %v2038 = vadd.f32 %v2037, %v1944
  %v2039 = vadd.f32 %v2038, %v1946
  %v2040 = vadd.f32 %v2039, %v1948
  %v2041 = vadd.f32 %v2040, %v1950
  %v2042 = vadd.f32 %v2041, %v1952
  %v2043 = vadd.f32 %v2042, %v1954
  %v2044 = vadd.f32 %v2043, %v1956
  %v2045 = vadd.f32 %v2044, %v1958
  %v2046 = vadd.f32 %v2045, %v1960
  %v2047 = vadd.f32 %v2046, %v1962
  %v2048 = vadd.f32 %v2047, %v1964
  %v2049 = vadd.f32 %v2048, %v1966
  %v2050 = vadd.f32 %v2049, %v1968
  %v2051 = vadd.f32 %v2050, %v1970
  %v2052 = vadd.f32 %v2051, %v1972
  %v2053 = vadd.f32 %v2052, %v1974
  %v2054 = vadd.f32 %v2053, %v1976
  %v2055 = vadd.f32 %v2054, %v1978
  %v2056 = vadd.f32 %v2055, %v1980
  %v2057 = vadd.f32 %v2056, %v1982
  %v2058 = vadd.f32 %v2057, %v1984
  %v2059 = vadd.f32 %v2058, %v1986
  %v2060 = vadd.f32 %v2059, %v1988
  %v2061 = vadd.f32 %v2060, %v1990
  %v2062 = vadd.f32 %v2061, %v1992
  %v2063 = vadd.f32 %v2062, %v1994
  %v2064 = vadd.f32 %v2063, %v1996
  %v2065 = vrot.slane %v2064, 4
  %v2066 = vadd.f32 %v2064, %v2065
  %v2067 = vrot.slane %v2066, 2
  %v2068 = vadd.f32 %v2066, %v2067
  %v2069 = vrot.slane %v2068, 1
  %v2070 = vadd.f32 %v2068, %v2069
  %2071 = vset.pattern.permute.xlu0 1
  %2072 = vperm.xlu0 %2071, %v1547
  %v2073 = vpop.permute.xlu0 %2072
  %2075 = vset.pattern.permute.xlu0 1
  %2076 = vperm.xlu0 %2075, %v1550
  %v2077 = vpop.permute.xlu0 %2076
  %2079 = vset.pattern.permute.xlu0 1
  %2080 = vperm.xlu0 %2079, %v1555
  %v2081 = vpop.permute.xlu0 %2080
  %2083 = vset.pattern.permute.xlu0 1
  %2084 = vperm.xlu0 %2083, %v1558
  %v2085 = vpop.permute.xlu0 %2084
  %2087 = vset.pattern.permute.xlu0 1
  %2088 = vperm.xlu0 %2087, %v1563
  %v2089 = vpop.permute.xlu0 %2088
  %2091 = vset.pattern.permute.xlu0 1
  %2092 = vperm.xlu0 %2091, %v1566
  %v2093 = vpop.permute.xlu0 %2092
  %2095 = vset.pattern.permute.xlu0 1
  %2096 = vperm.xlu0 %2095, %v1571
  %v2097 = vpop.permute.xlu0 %2096
  %2099 = vset.pattern.permute.xlu0 1
  %2100 = vperm.xlu0 %2099, %v1574
  %v2101 = vpop.permute.xlu0 %2100
  %2103 = vset.pattern.permute.xlu0 1
  %2104 = vperm.xlu0 %2103, %v1579
  %v2105 = vpop.permute.xlu0 %2104
  %2107 = vset.pattern.permute.xlu0 1
  %2108 = vperm.xlu0 %2107, %v1582
  %v2109 = vpop.permute.xlu0 %2108
  %2111 = vset.pattern.permute.xlu0 1
  %2112 = vperm.xlu0 %2111, %v1587
  %v2113 = vpop.permute.xlu0 %2112
  %2115 = vset.pattern.permute.xlu0 1
  %2116 = vperm.xlu0 %2115, %v1590
  %v2117 = vpop.permute.xlu0 %2116
  %2119 = vset.pattern.permute.xlu0 1
  %2120 = vperm.xlu0 %2119, %v1595
  %v2121 = vpop.permute.xlu0 %2120
  %2123 = vset.pattern.permute.xlu0 1
  %2124 = vperm.xlu0 %2123, %v1598
  %v2125 = vpop.permute.xlu0 %2124
  %2127 = vset.pattern.permute.xlu0 1
  %2128 = vperm.xlu0 %2127, %v1603
  %v2129 = vpop.permute.xlu0 %2128
  %2131 = vset.pattern.permute.xlu0 1
  %2132 = vperm.xlu0 %2131, %v1606
  %v2133 = vpop.permute.xlu0 %2132
  %2135 = vset.pattern.permute.xlu0 1
  %2136 = vperm.xlu0 %2135, %v1611
  %v2137 = vpop.permute.xlu0 %2136
  %2139 = vset.pattern.permute.xlu0 1
  %2140 = vperm.xlu0 %2139, %v1614
  %v2141 = vpop.permute.xlu0 %2140
  %2143 = vset.pattern.permute.xlu0 1
  %2144 = vperm.xlu0 %2143, %v1619
  %v2145 = vpop.permute.xlu0 %2144
  %2147 = vset.pattern.permute.xlu0 1
  %2148 = vperm.xlu0 %2147, %v1622
  %v2149 = vpop.permute.xlu0 %2148
  %2151 = vset.pattern.permute.xlu0 1
  %2152 = vperm.xlu0 %2151, %v1627
  %v2153 = vpop.permute.xlu0 %2152
  %2155 = vset.pattern.permute.xlu0 1
  %2156 = vperm.xlu0 %2155, %v1630
  %v2157 = vpop.permute.xlu0 %2156
  %2159 = vset.pattern.permute.xlu0 1
  %2160 = vperm.xlu0 %2159, %v1635
  %v2161 = vpop.permute.xlu0 %2160
  %2163 = vset.pattern.permute.xlu0 1
  %2164 = vperm.xlu0 %2163, %v1638
  %v2165 = vpop.permute.xlu0 %2164
  %2167 = vset.pattern.permute.xlu0 1
  %2168 = vperm.xlu0 %2167, %v1643
  %v2169 = vpop.permute.xlu0 %2168
  %2171 = vset.pattern.permute.xlu0 1
  %2172 = vperm.xlu0 %2171, %v1646
  %v2173 = vpop.permute.xlu0 %2172
  %2175 = vset.pattern.permute.xlu0 1
  %2176 = vperm.xlu0 %2175, %v1651
  %v2177 = vpop.permute.xlu0 %2176
  %2179 = vset.pattern.permute.xlu0 1
  %2180 = vperm.xlu0 %2179, %v1654
  %v2181 = vpop.permute.xlu0 %2180
  %2183 = vset.pattern.permute.xlu0 1
  %2184 = vperm.xlu0 %2183, %v1659
  %v2185 = vpop.permute.xlu0 %2184
  %2187 = vset.pattern.permute.xlu0 1
  %2188 = vperm.xlu0 %2187, %v1662
  %v2189 = vpop.permute.xlu0 %2188
  %2191 = vset.pattern.permute.xlu0 1
  %2192 = vperm.xlu0 %2191, %v1667
  %v2193 = vpop.permute.xlu0 %2192
  %2195 = vset.pattern.permute.xlu0 1
  %2196 = vperm.xlu0 %2195, %v1670
  %v2197 = vpop.permute.xlu0 %2196
  %v2199 = vsel %vm1709, %v2073, 0.0
  %v2200 = vsel %vm1710, %v2073, 0.0
  %v2201 = vsel %vm1711, %v2077, 0.0
  %v2202 = vsel %vm1712, %v2077, 0.0
  %v2203 = vsel %vm1713, %v2081, 0.0
  %v2204 = vsel %vm1714, %v2081, 0.0
  %v2205 = vsel %vm1715, %v2085, 0.0
  %v2206 = vsel %vm1716, %v2085, 0.0
  %v2207 = vsel %vm1717, %v2089, 0.0
  %v2208 = vsel %vm1718, %v2089, 0.0
  %v2209 = vsel %vm1719, %v2093, 0.0
  %v2210 = vsel %vm1720, %v2093, 0.0
  %v2211 = vsel %vm1721, %v2097, 0.0
  %v2212 = vsel %vm1722, %v2097, 0.0
  %v2213 = vsel %vm1723, %v2101, 0.0
  %v2214 = vsel %vm1724, %v2101, 0.0
  %v2215 = vsel %vm1725, %v2105, 0.0
  %v2216 = vsel %vm1726, %v2105, 0.0
  %v2217 = vsel %vm1727, %v2109, 0.0
  %v2218 = vsel %vm1728, %v2109, 0.0
  %v2219 = vsel %vm1729, %v2113, 0.0
  %v2220 = vsel %vm1730, %v2113, 0.0
  %v2221 = vsel %vm1731, %v2117, 0.0
  %v2222 = vsel %vm1732, %v2117, 0.0
  %v2223 = vsel %vm1733, %v2121, 0.0
  %v2224 = vsel %vm1734, %v2121, 0.0
  %v2225 = vsel %vm1735, %v2125, 0.0
  %v2226 = vsel %vm1736, %v2125, 0.0
  %v2227 = vsel %vm1737, %v2129, 0.0
  %v2228 = vsel %vm1738, %v2129, 0.0
  %v2229 = vsel %vm1739, %v2133, 0.0
  %v2230 = vsel %vm1740, %v2133, 0.0
  %v2231 = vsel %vm1741, %v2137, 0.0
  %v2232 = vsel %vm1742, %v2137, 0.0
  %v2233 = vsel %vm1743, %v2141, 0.0
  %v2234 = vsel %vm1744, %v2141, 0.0
  %v2235 = vsel %vm1745, %v2145, 0.0
  %v2236 = vsel %vm1746, %v2145, 0.0
  %v2237 = vsel %vm1747, %v2149, 0.0
  %v2238 = vsel %vm1748, %v2149, 0.0
  %v2239 = vsel %vm1749, %v2153, 0.0
  %v2240 = vsel %vm1750, %v2153, 0.0
  %v2241 = vsel %vm1751, %v2157, 0.0
  %v2242 = vsel %vm1752, %v2157, 0.0
  %v2243 = vsel %vm1753, %v2161, 0.0
  %v2244 = vsel %vm1754, %v2161, 0.0
  %v2245 = vsel %vm1755, %v2165, 0.0
  %v2246 = vsel %vm1756, %v2165, 0.0
  %v2247 = vsel %vm1757, %v2169, 0.0
  %v2248 = vsel %vm1758, %v2169, 0.0
  %v2249 = vsel %vm1759, %v2173, 0.0
  %v2250 = vsel %vm1760, %v2173, 0.0
  %v2251 = vsel %vm1761, %v2177, 0.0
  %v2252 = vsel %vm1762, %v2177, 0.0
  %v2253 = vsel %vm1763, %v2181, 0.0
  %v2254 = vsel %vm1764, %v2181, 0.0
  %v2255 = vsel %vm1765, %v2185, 0.0
  %v2256 = vsel %vm1766, %v2185, 0.0
  %v2257 = vsel %vm1767, %v2189, 0.0
  %v2258 = vsel %vm1768, %v2189, 0.0
  %v2259 = vsel %vm1769, %v2193, 0.0
  %v2260 = vsel %vm1770, %v2193, 0.0
  %v2261 = vsel %vm1771, %v2197, 0.0
  %v2262 = vsel %vm1772, %v2197, 0.0
  %v2263 = vadd.f32 %v2199, %v2201
  %v2264 = vadd.f32 %v2263, %v2203
  %v2265 = vadd.f32 %v2264, %v2205
  %v2266 = vadd.f32 %v2265, %v2207
  %v2267 = vadd.f32 %v2266, %v2209
  %v2268 = vadd.f32 %v2267, %v2211
  %v2269 = vadd.f32 %v2268, %v2213
  %v2270 = vadd.f32 %v2269, %v2215
  %v2271 = vadd.f32 %v2270, %v2217
  %v2272 = vadd.f32 %v2271, %v2219
  %v2273 = vadd.f32 %v2272, %v2221
  %v2274 = vadd.f32 %v2273, %v2223
  %v2275 = vadd.f32 %v2274, %v2225
  %v2276 = vadd.f32 %v2275, %v2227
  %v2277 = vadd.f32 %v2276, %v2229
  %v2278 = vadd.f32 %v2277, %v2231
  %v2279 = vadd.f32 %v2278, %v2233
  %v2280 = vadd.f32 %v2279, %v2235
  %v2281 = vadd.f32 %v2280, %v2237
  %v2282 = vadd.f32 %v2281, %v2239
  %v2283 = vadd.f32 %v2282, %v2241
  %v2284 = vadd.f32 %v2283, %v2243
  %v2285 = vadd.f32 %v2284, %v2245
  %v2286 = vadd.f32 %v2285, %v2247
  %v2287 = vadd.f32 %v2286, %v2249
  %v2288 = vadd.f32 %v2287, %v2251
  %v2289 = vadd.f32 %v2288, %v2253
  %v2290 = vadd.f32 %v2289, %v2255
  %v2291 = vadd.f32 %v2290, %v2257
  %v2292 = vadd.f32 %v2291, %v2259
  %v2293 = vadd.f32 %v2292, %v2261
  %v2294 = vrot.slane %v2293, 4
  %v2295 = vadd.f32 %v2293, %v2294
  %v2296 = vrot.slane %v2295, 2
  %v2297 = vadd.f32 %v2295, %v2296
  %v2298 = vrot.slane %v2297, 1
  %v2299 = vadd.f32 %v2297, %v2298
  %v2300 = vadd.f32 %v2200, %v2202
  %v2301 = vadd.f32 %v2300, %v2204
  %v2302 = vadd.f32 %v2301, %v2206
  %v2303 = vadd.f32 %v2302, %v2208
  %v2304 = vadd.f32 %v2303, %v2210
  %v2305 = vadd.f32 %v2304, %v2212
  %v2306 = vadd.f32 %v2305, %v2214
  %v2307 = vadd.f32 %v2306, %v2216
  %v2308 = vadd.f32 %v2307, %v2218
  %v2309 = vadd.f32 %v2308, %v2220
  %v2310 = vadd.f32 %v2309, %v2222
  %v2311 = vadd.f32 %v2310, %v2224
  %v2312 = vadd.f32 %v2311, %v2226
  %v2313 = vadd.f32 %v2312, %v2228
  %v2314 = vadd.f32 %v2313, %v2230
  %v2315 = vadd.f32 %v2314, %v2232
  %v2316 = vadd.f32 %v2315, %v2234
  %v2317 = vadd.f32 %v2316, %v2236
  %v2318 = vadd.f32 %v2317, %v2238
  %v2319 = vadd.f32 %v2318, %v2240
  %v2320 = vadd.f32 %v2319, %v2242
  %v2321 = vadd.f32 %v2320, %v2244
  %v2322 = vadd.f32 %v2321, %v2246
  %v2323 = vadd.f32 %v2322, %v2248
  %v2324 = vadd.f32 %v2323, %v2250
  %v2325 = vadd.f32 %v2324, %v2252
  %v2326 = vadd.f32 %v2325, %v2254
  %v2327 = vadd.f32 %v2326, %v2256
  %v2328 = vadd.f32 %v2327, %v2258
  %v2329 = vadd.f32 %v2328, %v2260
  %v2330 = vadd.f32 %v2329, %v2262
  %v2331 = vrot.slane %v2330, 4
  %v2332 = vadd.f32 %v2330, %v2331
  %v2333 = vrot.slane %v2332, 2
  %v2334 = vadd.f32 %v2332, %v2333
  %v2335 = vrot.slane %v2334, 1
  %v2336 = vadd.f32 %v2334, %v2335
  %v2337 = vld [vmem:[%s1] sm:$0x3]
  %v2339 = vlaneseq
  %v2340 = vshrl.u32 %v2339, 7
  %v2341 = vsub.s32 0, %v2340
  %v2342 = vrot.slane %v2337, %v2341
  %v2343 = vlaneseq
  %v2344 = vshrl.u32 %v2343, 7
  %v2345 = vsub.s32 1, %v2344
  %v2346 = vrot.slane %v2337, %v2345
  %v2349 = vmul.f32 %v2033, %v2342
  %v2350 = vmul.f32 %v2070, %v2346
  %v2351 = vadd.f32 %v2349, %v2299
  %v2352 = vadd.f32 %v2350, %v2336
  %v2355 = vcombine.low %v2351, %v2352
  %v2357 = vunpack.c.l.s4 1966171168
  %v2358 = vunpack.c.0.s8 %v2357
  %v2359 = vlaneseq
  %v2360 = vshrl.u32 %v2359, 7
  %v2361 = vsub.s32 %v2358, %v2360
  %v2362 = vrot.slane %v2355, %v2361
  %v2364 = vunpack.c.l.s4 1966171168
  %v2365 = vunpack.c.0.s8 %v2364
  %v2366 = vlaneseq
  %v2367 = vshrl.u32 %v2366, 7
  %v2368 = vsub.s32 %v2365, %v2367
  %v2369 = vrot.slane %v2362, %v2368
  %v2371 = vlaneseq
  %vm2372 = vcmp.ge.s32.totalorder %v2371, 0
  %vm2373 = vcmp.lt.s32.totalorder %v2371, 256
  %vm2374 = vmand %vm2372, %vm2373
  %2375 = vst.msk [vmem:[%s10] sm:$0x3] %vm2374, %v2369
  // Predicated region
  $region42: #{affine_expr_decoder.1} parent=0 // pred_check
    _
  $region43: #{affine_expr_decoder.1} parent=0 // pred_check_branch
    %2377 = sbr.rel (0) target = $region45
  $region44: #{affine_expr_decoder.1} parent=0 // pred_region
    _
  $region45: #{affine_expr_decoder.1} parent=0 // pred_fallthru
    _
  // Predicated region
  $region46: #{affine_expr_decoder.1} parent=0 // pred_check
    _
  $region47: #{affine_expr_decoder.1} parent=0 // pred_check_branch
    %2379 = sbr.rel (0) target = $region49
  $region48: #{affine_expr_decoder.1} parent=0 // pred_region
    _
  $region49: #{affine_expr_decoder.1} parent=0 // pred_fallthru
    _

</llo_original>
